<compile_context>
chip_gen: v7x
topology: tpu7x:2x2x1
jax: 0.10.0
libtpu: 0.0.40
codegen_flags: <defaults>
</compile_context>

<pallas_src>
import functools
import math

import jax
import jax.numpy as jnp
from jax.experimental import pallas as pl
from jax.experimental.pallas import tpu as pltpu

HIDDEN = 20
HIDDEN_PAD = 24          # pad hidden width to a multiple of 8 (f32 sublanes)
NUM_LAYERS = 4           # -> 5 Linear layers total (as in the PyTorch module)
NUM_HIDDEN = NUM_LAYERS - 1   # hidden->hidden matmuls (stacked in one buffer)
MAX_TILE_N = 8192        # batch tile cap (lane axis); multiple of 128


def _pinn_mlp_kernel(x_ref, y_ref, t_ref,
                     w1_ref, b1_ref,
                     wh_ref, bh_ref,
                     w5_ref, b5_ref,
                     u_ref, v_ref):
    """One batch-tile of the MLP forward pass, entirely in VMEM.

    Layout: activations are (features, tile_n); the batch lives on lanes.
    """
    # Assemble the (3, tile_n) input tile in-kernel from the three lane-major
    # rows (a couple of sublane writes — negligible).  The 1/5000 time scale
    # is already folded into column 2 of w1, so t comes in raw.
    h = jnp.concatenate([x_ref[...], y_ref[...], t_ref[...]], axis=0)

    # Linear(3, H) + Tanh
    h = jnp.tanh(jnp.dot(w1_ref[...], h,
                         preferred_element_type=jnp.float32) + b1_ref[...])

    # 3 x (Linear(H, H) + Tanh) — static unroll over the stacked weights.
    for l in range(NUM_HIDDEN):
        h = jnp.tanh(jnp.dot(wh_ref[l], h,
                             preferred_element_type=jnp.float32) + bh_ref[l])

    # Linear(H, 2) + Sigmoid, split into the u / v rows (both lane-dense).
    logits = jnp.dot(w5_ref[...], h,
                     preferred_element_type=jnp.float32) + b5_ref[...]
    out = jax.nn.sigmoid(logits)             # (2, tile_n)
    u_ref[...] = out[0:1, :]
    v_ref[...] = out[1:2, :]


def _pack_params(params, hidden_pad=HIDDEN_PAD):
    """Torch-style (out,in)/(out,) params -> padded, packed kernel params.

    * hidden width zero-padded HIDDEN -> hidden_pad (inert: tanh(0)=0, padded
      weight rows/cols and biases are zero)
    * the t/5000 normalisation is folded into column 2 of the first weight
    * the 3 hidden (H,H) layers are stacked into one (3, HP, HP) weight stack
      and one (3, HP, 1) bias stack
    """
    (w1, b1), *hidden, (w5, b5) = params
    hp = hidden_pad

    w1p = jnp.zeros((hp, 3), jnp.float32).at[:w1.shape[0], :].set(w1)
    w1p = w1p.at[:, 2].multiply(1.0 / 5000.0)       # fold t normalisation
    b1p = jnp.zeros((hp, 1), jnp.float32).at[:b1.shape[0], 0].set(b1)

    whp = jnp.zeros((len(hidden), hp, hp), jnp.float32)
    bhp = jnp.zeros((len(hidden), hp, 1), jnp.float32)
    for l, (w, b) in enumerate(hidden):
        whp = whp.at[l, :w.shape[0], :w.shape[1]].set(w)
        bhp = bhp.at[l, :b.shape[0], 0].set(b)

    w5p = jnp.zeros((2, hp), jnp.float32).at[:, :w5.shape[1]].set(w5)
    b5p = b5.reshape(2, 1).astype(jnp.float32)
    return w1p, b1p, whp, bhp, w5p, b5p


def _choose_tile_n(n, max_tile=MAX_TILE_N):
    """Pick the batch tile (lane axis): >= 2 grid steps, even step count (the
    single "parallel" grid axis shards tiles across v7x's two TensorCores),
    tiles a multiple of 128 lanes, capped so per-step overhead is amortised."""
    steps = max(2, pl.cdiv(n, max_tile))
    if steps % 2:
        steps += 1
    tile = 128 * pl.cdiv(pl.cdiv(n, steps), 128)
    return int(max(128, min(max_tile, tile)))


def _const_spec(arr):
    """Whole (tiny) parameter array resident in VMEM; constant block index."""
    return pl.BlockSpec(arr.shape, lambda i: (0,) * arr.ndim)


@functools.partial(jax.jit, static_argnames=("tile_n",))
def gray_scott_forward(x, y, t, params, tile_n=None):
    """JAX/Pallas equivalent of GrayScott2DPINN.forward(x, y, t).

    x, y, t: (N, 1) float32.  Returns (u, v) each (N, 1) float32.
    """
    n = x.shape[0]
    if tile_n is None:
        tile_n = _choose_tile_n(n)

    # Free reshapes of contiguous (N,1) data: batch goes on the lane axis.
    x_row = x.astype(jnp.float32).reshape(1, n)
    y_row = y.astype(jnp.float32).reshape(1, n)
    t_row = t.astype(jnp.float32).reshape(1, n)

    w1p, b1p, whp, bhp, w5p, b5p = _pack_params(params)

    # No batch padding: last block may be partial; Pallas masks OOB stores and
    # garbage lanes never mix with valid lanes (math is purely per-column).
    grid = (pl.cdiv(n, tile_n),)

    row_spec = pl.BlockSpec((1, tile_n), lambda i: (0, i))

    u_row, v_row = pl.pallas_call(
        _pinn_mlp_kernel,
        out_shape=(jax.ShapeDtypeStruct((1, n), jnp.float32),
                   jax.ShapeDtypeStruct((1, n), jnp.float32)),
        grid_spec=pl.GridSpec(
            grid=grid,
            in_specs=[row_spec, row_spec, row_spec,
                      _const_spec(w1p), _const_spec(b1p),
                      _const_spec(whp), _const_spec(bhp),
                      _const_spec(w5p), _const_spec(b5p)],
            out_specs=(row_spec, row_spec)),
        compiler_params=pltpu.CompilerParams(
            dimension_semantics=("parallel",)),
    )(x_row, y_row, t_row, w1p, b1p, whp, bhp, w5p, b5p)

    return u_row.reshape(n, 1), v_row.reshape(n, 1)


def init_params(key, hidden=HIDDEN, num_layers=NUM_LAYERS):
    """Deterministic synthetic parameters with the same shapes as the module.

    Weights stored (out_features, in_features) like nn.Linear; biases (out,).
    """
    dims = [3] + [hidden] * num_layers + [2]
    params = []
    for din, dout in zip(dims[:-1], dims[1:]):
        key, kw, kb = jax.random.split(key, 3)
        bound = 1.0 / math.sqrt(din)   # mimic nn.Linear default init range
        w = jax.random.uniform(kw, (dout, din), jnp.float32, -bound, bound)
        b = jax.random.uniform(kb, (dout,), jnp.float32, -bound, bound)
        params.append((w, b))
    return params


def _reference_forward(x, y, t, params):
    """Pure-JAX reference for correctness checking (unpadded, unpacked)."""
    h = jnp.concatenate([x, y, t / 5000.0], axis=1)
    for (w, b) in params[:-1]:
        h = jnp.tanh(h @ w.T + b)
    w, b = params[-1]
    out = jax.nn.sigmoid(h @ w.T + b)
    return out[:, 0:1], out[:, 1:2]


if __name__ == "__main__":
    key = jax.random.PRNGKey(0)
    kp, kx, ky, kt = jax.random.split(key, 4)

    params = init_params(kp)

    # Small collocation batch; deliberately NOT a multiple of 128 or of the
    # chosen tile so the partial-last-block (masked store) path is exercised,
    # with 2 grid steps so the pipeline / both v7x cores see work.
    N = 1000
    x = jax.random.uniform(kx, (N, 1), jnp.float32, 0.0, 1.0)
    y = jax.random.uniform(ky, (N, 1), jnp.float32, 0.0, 1.0)
    t = jax.random.uniform(kt, (N, 1), jnp.float32, 0.0, 5000.0)

    u, v = gray_scott_forward(x, y, t, params)
    u, v = jax.block_until_ready((u, v))

    u_ref, v_ref = _reference_forward(x, y, t, params)
    assert u.shape == (N, 1) and v.shape == (N, 1)
    assert jnp.allclose(u, u_ref, atol=1e-5, rtol=1e-5)
    assert jnp.allclose(v, v_ref, atol=1e-5, rtol=1e-5)

    print("KERNEL_OK")
</pallas_src>

<mosaic_0001>
module attributes {stable_mosaic.version = 11 : i64} {
  func.func @_pinn_mlp_kernel(%arg0: i32, %arg1: memref<1x512xf32, #tpu.memory_space<vmem>>, %arg2: memref<1x512xf32, #tpu.memory_space<vmem>>, %arg3: memref<1x512xf32, #tpu.memory_space<vmem>>, %arg4: memref<24x3xf32, #tpu.memory_space<vmem>>, %arg5: memref<24x1xf32, #tpu.memory_space<vmem>>, %arg6: memref<3x24x24xf32, #tpu.memory_space<vmem>>, %arg7: memref<3x24x1xf32, #tpu.memory_space<vmem>>, %arg8: memref<2x24xf32, #tpu.memory_space<vmem>>, %arg9: memref<2x1xf32, #tpu.memory_space<vmem>>, %arg10: memref<1x512xf32, #tpu.memory_space<vmem>>, %arg11: memref<1x512xf32, #tpu.memory_space<vmem>>) attributes {dimension_semantics = [#tpu.dimension_semantics<parallel>], iteration_bounds = array<i64: 2>, scalar_prefetch = 0 : i64, scratch_operands = 0 : i64, tpu.core_type = #tpu.core_type<tc>, window_params = [{transform_indices = @transform_0, window_bounds = array<i64: 1, 512>}, {transform_indices = @transform_1, window_bounds = array<i64: 1, 512>}, {transform_indices = @transform_2, window_bounds = array<i64: 1, 512>}, {pipeline_mode = #tpu.pipeline_mode<synchronous>, transform_indices = @transform_3, window_bounds = array<i64: 24, 3>}, {pipeline_mode = #tpu.pipeline_mode<synchronous>, transform_indices = @transform_4, window_bounds = array<i64: 24, 1>}, {pipeline_mode = #tpu.pipeline_mode<synchronous>, transform_indices = @transform_5, window_bounds = array<i64: 3, 24, 24>}, {pipeline_mode = #tpu.pipeline_mode<synchronous>, transform_indices = @transform_6, window_bounds = array<i64: 3, 24, 1>}, {pipeline_mode = #tpu.pipeline_mode<synchronous>, transform_indices = @transform_7, window_bounds = array<i64: 2, 24>}, {pipeline_mode = #tpu.pipeline_mode<synchronous>, transform_indices = @transform_8, window_bounds = array<i64: 2, 1>}, {transform_indices = @transform_9, window_bounds = array<i64: 1, 512>}, {transform_indices = @transform_10, window_bounds = array<i64: 1, 512>}]} {
    %c0 = arith.constant 0 : index
    %c0_0 = arith.constant 0 : index
    %0 = vector.load %arg1[%c0, %c0_0] : memref<1x512xf32, #tpu.memory_space<vmem>>, vector<1x512xf32>
    %c0_1 = arith.constant 0 : index
    %c0_2 = arith.constant 0 : index
    %1 = vector.load %arg2[%c0_1, %c0_2] : memref<1x512xf32, #tpu.memory_space<vmem>>, vector<1x512xf32>
    %c0_3 = arith.constant 0 : index
    %c0_4 = arith.constant 0 : index
    %2 = vector.load %arg3[%c0_3, %c0_4] : memref<1x512xf32, #tpu.memory_space<vmem>>, vector<1x512xf32>
    %3 = tpu.concatenate %0, %1, %2 in 0 : vector<1x512xf32>, vector<1x512xf32>, vector<1x512xf32> -> vector<3x512xf32>
    %c0_5 = arith.constant 0 : index
    %c0_6 = arith.constant 0 : index
    %4 = vector.load %arg4[%c0_5, %c0_6] : memref<24x3xf32, #tpu.memory_space<vmem>>, vector<24x3xf32>
    %cst = arith.constant dense<0.000000e+00> : vector<24x512xf32>
    %5 = tpu.matmul %4, %3, %cst {dimension_numbers = #tpu.dot_dimension_numbers<[1], [0], [0], [1], [0, 0, 1, 1], [], []>} : vector<24x3xf32>, vector<3x512xf32>, vector<24x512xf32> -> vector<24x512xf32>
    %c0_7 = arith.constant 0 : index
    %c0_8 = arith.constant 0 : index
    %6 = vector.load %arg5[%c0_7, %c0_8] : memref<24x1xf32, #tpu.memory_space<vmem>>, vector<24x1xf32>
    %7 = vector.broadcast %6 : vector<24x1xf32> to vector<24x512xf32>
    %8 = arith.addf %5, %7 : vector<24x512xf32>
    %9 = math.tanh %8 : vector<24x512xf32>
    %c0_9 = arith.constant 0 : index
    %c0_10 = arith.constant 0 : index
    %c0_11 = arith.constant 0 : index
    %10 = vector.load %arg6[%c0_9, %c0_10, %c0_11] : memref<3x24x24xf32, #tpu.memory_space<vmem>>, vector<1x24x24xf32>
    %11 = vector.shape_cast %10 : vector<1x24x24xf32> to vector<24x24xf32>
    %cst_12 = arith.constant dense<0.000000e+00> : vector<24x512xf32>
    %12 = tpu.matmul %11, %9, %cst_12 {dimension_numbers = #tpu.dot_dimension_numbers<[1], [0], [0], [1], [0, 0, 1, 1], [], []>} : vector<24x24xf32>, vector<24x512xf32>, vector<24x512xf32> -> vector<24x512xf32>
    %c0_13 = arith.constant 0 : index
    %c0_14 = arith.constant 0 : index
    %c0_15 = arith.constant 0 : index
    %13 = vector.load %arg7[%c0_13, %c0_14, %c0_15] : memref<3x24x1xf32, #tpu.memory_space<vmem>>, vector<1x24x1xf32>
    %14 = vector.shape_cast %13 : vector<1x24x1xf32> to vector<24x1xf32>
    %15 = vector.broadcast %14 : vector<24x1xf32> to vector<24x512xf32>
    %16 = arith.addf %12, %15 : vector<24x512xf32>
    %17 = math.tanh %16 : vector<24x512xf32>
    %c1 = arith.constant 1 : index
    %c0_16 = arith.constant 0 : index
    %c0_17 = arith.constant 0 : index
    %18 = vector.load %arg6[%c1, %c0_16, %c0_17] : memref<3x24x24xf32, #tpu.memory_space<vmem>>, vector<1x24x24xf32>
    %19 = vector.shape_cast %18 : vector<1x24x24xf32> to vector<24x24xf32>
    %cst_18 = arith.constant dense<0.000000e+00> : vector<24x512xf32>
    %20 = tpu.matmul %19, %17, %cst_18 {dimension_numbers = #tpu.dot_dimension_numbers<[1], [0], [0], [1], [0, 0, 1, 1], [], []>} : vector<24x24xf32>, vector<24x512xf32>, vector<24x512xf32> -> vector<24x512xf32>
    %c1_19 = arith.constant 1 : index
    %c0_20 = arith.constant 0 : index
    %c0_21 = arith.constant 0 : index
    %21 = vector.load %arg7[%c1_19, %c0_20, %c0_21] : memref<3x24x1xf32, #tpu.memory_space<vmem>>, vector<1x24x1xf32>
    %22 = vector.shape_cast %21 : vector<1x24x1xf32> to vector<24x1xf32>
    %23 = vector.broadcast %22 : vector<24x1xf32> to vector<24x512xf32>
    %24 = arith.addf %20, %23 : vector<24x512xf32>
    %25 = math.tanh %24 : vector<24x512xf32>
    %c2 = arith.constant 2 : index
    %c0_22 = arith.constant 0 : index
    %c0_23 = arith.constant 0 : index
    %26 = vector.load %arg6[%c2, %c0_22, %c0_23] : memref<3x24x24xf32, #tpu.memory_space<vmem>>, vector<1x24x24xf32>
    %27 = vector.shape_cast %26 : vector<1x24x24xf32> to vector<24x24xf32>
    %cst_24 = arith.constant dense<0.000000e+00> : vector<24x512xf32>
    %28 = tpu.matmul %27, %25, %cst_24 {dimension_numbers = #tpu.dot_dimension_numbers<[1], [0], [0], [1], [0, 0, 1, 1], [], []>} : vector<24x24xf32>, vector<24x512xf32>, vector<24x512xf32> -> vector<24x512xf32>
    %c2_25 = arith.constant 2 : index
    %c0_26 = arith.constant 0 : index
    %c0_27 = arith.constant 0 : index
    %29 = vector.load %arg7[%c2_25, %c0_26, %c0_27] : memref<3x24x1xf32, #tpu.memory_space<vmem>>, vector<1x24x1xf32>
    %30 = vector.shape_cast %29 : vector<1x24x1xf32> to vector<24x1xf32>
    %31 = vector.broadcast %30 : vector<24x1xf32> to vector<24x512xf32>
    %32 = arith.addf %28, %31 : vector<24x512xf32>
    %33 = math.tanh %32 : vector<24x512xf32>
    %c0_28 = arith.constant 0 : index
    %c0_29 = arith.constant 0 : index
    %34 = vector.load %arg8[%c0_28, %c0_29] : memref<2x24xf32, #tpu.memory_space<vmem>>, vector<2x24xf32>
    %cst_30 = arith.constant dense<0.000000e+00> : vector<2x512xf32>
    %35 = tpu.matmul %34, %33, %cst_30 {dimension_numbers = #tpu.dot_dimension_numbers<[1], [0], [0], [1], [0, 0, 1, 1], [], []>} : vector<2x24xf32>, vector<24x512xf32>, vector<2x512xf32> -> vector<2x512xf32>
    %c0_31 = arith.constant 0 : index
    %c0_32 = arith.constant 0 : index
    %36 = vector.load %arg9[%c0_31, %c0_32] : memref<2x1xf32, #tpu.memory_space<vmem>>, vector<2x1xf32>
    %37 = vector.broadcast %36 : vector<2x1xf32> to vector<2x512xf32>
    %38 = arith.addf %35, %37 : vector<2x512xf32>
    %39 = arith.negf %38 : vector<2x512xf32>
    %40 = math.exp %39 : vector<2x512xf32>
    %cst_33 = arith.constant 1.000000e+00 : f32
    %41 = vector.broadcast %cst_33 : f32 to vector<2x512xf32>
    %42 = arith.addf %41, %40 : vector<2x512xf32>
    %43 = arith.divf %41, %42 : vector<2x512xf32>
    %44 = vector.extract_strided_slice %43 {offsets = [0, 0], sizes = [1, 512], strides = [1, 1]} : vector<2x512xf32> to vector<1x512xf32>
    %c0_34 = arith.constant 0 : index
    %c0_35 = arith.constant 0 : index
    %45 = vector.load %arg10[%c0_34, %c0_35] : memref<1x512xf32, #tpu.memory_space<vmem>>, vector<1x512xf32>
    tpu.vector_store %arg10[%c0_34, %c0_35], %44 {strides = array<i32>} : memref<1x512xf32, #tpu.memory_space<vmem>>, vector<1x512xf32>,
    %46 = vector.extract_strided_slice %43 {offsets = [1, 0], sizes = [1, 512], strides = [1, 1]} : vector<2x512xf32> to vector<1x512xf32>
    %c0_36 = arith.constant 0 : index
    %c0_37 = arith.constant 0 : index
    %47 = vector.load %arg11[%c0_36, %c0_37] : memref<1x512xf32, #tpu.memory_space<vmem>>, vector<1x512xf32>
    tpu.vector_store %arg11[%c0_36, %c0_37], %46 {strides = array<i32>} : memref<1x512xf32, #tpu.memory_space<vmem>>, vector<1x512xf32>,
    return
  }
  func.func @transform_0(%arg0: i32) -> (i32, i32) {
    %c0_i32 = arith.constant 0 : i32
    %c0_i32_0 = arith.constant 0 : i32
    return %c0_i32, %arg0 : i32, i32
  }
  func.func @transform_1(%arg0: i32) -> (i32, i32) {
    %c0_i32 = arith.constant 0 : i32
    %c0_i32_0 = arith.constant 0 : i32
    return %c0_i32, %arg0 : i32, i32
  }
  func.func @transform_2(%arg0: i32) -> (i32, i32) {
    %c0_i32 = arith.constant 0 : i32
    %c0_i32_0 = arith.constant 0 : i32
    return %c0_i32, %arg0 : i32, i32
  }
  func.func @transform_3(%arg0: i32) -> (i32, i32) {
    %c0_i32 = arith.constant 0 : i32
    %c0_i32_0 = arith.constant 0 : i32
    %c0_i32_1 = arith.constant 0 : i32
    return %c0_i32, %c0_i32_0 : i32, i32
  }
  func.func @transform_4(%arg0: i32) -> (i32, i32) {
    %c0_i32 = arith.constant 0 : i32
    %c0_i32_0 = arith.constant 0 : i32
    %c0_i32_1 = arith.constant 0 : i32
    return %c0_i32, %c0_i32_0 : i32, i32
  }
  func.func @transform_5(%arg0: i32) -> (i32, i32, i32) {
    %c0_i32 = arith.constant 0 : i32
    %c0_i32_0 = arith.constant 0 : i32
    %c0_i32_1 = arith.constant 0 : i32
    %c0_i32_2 = arith.constant 0 : i32
    return %c0_i32, %c0_i32_0, %c0_i32_1 : i32, i32, i32
  }
  func.func @transform_6(%arg0: i32) -> (i32, i32, i32) {
    %c0_i32 = arith.constant 0 : i32
    %c0_i32_0 = arith.constant 0 : i32
    %c0_i32_1 = arith.constant 0 : i32
    %c0_i32_2 = arith.constant 0 : i32
    return %c0_i32, %c0_i32_0, %c0_i32_1 : i32, i32, i32
  }
  func.func @transform_7(%arg0: i32) -> (i32, i32) {
    %c0_i32 = arith.constant 0 : i32
    %c0_i32_0 = arith.constant 0 : i32
    %c0_i32_1 = arith.constant 0 : i32
    return %c0_i32, %c0_i32_0 : i32, i32
  }
  func.func @transform_8(%arg0: i32) -> (i32, i32) {
    %c0_i32 = arith.constant 0 : i32
    %c0_i32_0 = arith.constant 0 : i32
    %c0_i32_1 = arith.constant 0 : i32
    return %c0_i32, %c0_i32_0 : i32, i32
  }
  func.func @transform_9(%arg0: i32) -> (i32, i32) {
    %c0_i32 = arith.constant 0 : i32
    %c0_i32_0 = arith.constant 0 : i32
    return %c0_i32, %arg0 : i32, i32
  }
  func.func @transform_10(%arg0: i32) -> (i32, i32) {
    %c0_i32 = arith.constant 0 : i32
    %c0_i32_0 = arith.constant 0 : i32
    return %c0_i32, %arg0 : i32, i32
  }
}

</mosaic_0001>

<llo_original>
// kernel: gray_scott_forward.1
$region0: #{gray_scott_forward.1}
  #allocation0 [shape = 'u32[]', space=smem, size = 0x4, offset = 0x4, fixed_abs, tag = 'smem constant byte address 0x4 - core index']
  #allocation1 [shape = 'u32[144,128]{1,0:T(1,128)}', space=vmem, size = 0x12000, scoped, tag = 'internal scratch']
  %s0 = inlined_call_operand.vmem [shape: f32[1,1000], index: 0, kind: input, shape index: {}]
  %s1 = inlined_call_operand.vmem [shape: f32[1,1000], index: 1, kind: input, shape index: {}]
  %s2 = inlined_call_operand.vmem [shape: f32[1,1000], index: 2, kind: input, shape index: {}]
  %s3 = inlined_call_operand.vmem [shape: f32[24,3], index: 3, kind: input, shape index: {}]
  %s4 = inlined_call_operand.vmem [shape: f32[24,1], index: 4, kind: input, shape index: {}]
  %s5 = inlined_call_operand.vmem [shape: f32[3,24,24], index: 5, kind: input, shape index: {}]
  %s6 = inlined_call_operand.vmem [shape: f32[3,24,1], index: 6, kind: input, shape index: {}]
  %s7 = inlined_call_operand.vmem [shape: f32[2,24], index: 7, kind: input, shape index: {}]
  %s8 = inlined_call_operand.vmem [shape: f32[2,1], index: 8, kind: input, shape index: {}]
  %s9 = inlined_call_operand.hbm [shape: f32[1,1000], index: 9, kind: output, shape index: {0}]
  %s10 = inlined_call_operand.hbm [shape: f32[1,1000], index: 10, kind: output, shape index: {1}]
  %11 = xla_tuple %s9, %s10
  %s12 = sld [smem:[#allocation0]]
  $region77: #{gray_scott_forward.1} parent=0
    _
  %s14 = ssub.s32 1, %s12
  %s15 = scalar_select 0, %s14, %s12
  $region1: #{gray_scott_forward.1} parent=0
    #allocation2 [shape = 'u8[4096]{0}', space=vmem, size = 0x1000, scoped, tag = 'output window, operand 0']
    #allocation3 [shape = 's32[2]{0}', space=sflag, size = 0x8, scoped, tag = 'scoped memory for gray_scott_forward.1']
    #allocation4 [shape = 'u8[4096]{0}', space=vmem, size = 0x1000, scoped, tag = 'output window, operand 1']
    #allocation5 [shape = 's32[2]{0}', space=sflag, size = 0x8, scoped, tag = 'scoped memory for gray_scott_forward.1']
    %16 = vsyncpa [#allocation3], 0
    %s17 = scalar_lea.sflag [#allocation3], 1
    %18 = vsyncpa %s17, 0
    %19 = vsyncpa [#allocation5], 0
    %s20 = scalar_lea.sflag [#allocation5], 1
    %21 = vsyncpa %s20, 0
    loop: start=0, step=1, limit=4
    $region2: #{gray_scott_forward.1} parent=1 // loop_pre_header
      _
    $region3: #{gray_scott_forward.1} parent=1 // loop_header
      %s23 = sphi 0, %s27
      %p24 = scmp.ge.s32.totalorder %s23, 4
      %s33 = sphi 0, %s35
      %s36 = sphi 0, %s33
      %s37 = sphi 0, %s36
      %s53 = sphi 0, %s37
      %s59 = sphi 0, %s61
      %s62 = sphi 0, %s59
      %s63 = sphi 0, %s62
      %s79 = sphi 0, %s63
      %s85 = sphi 0, %s87
      %s88 = sphi 0, %s85
      %s89 = sphi 0, %s88
      %s105 = sphi 0, %s89
      %s109 = sphi 0, %s109
      %s111 = sphi 0, %s109
      %s112 = sphi 0, %s111
      %s126 = sphi 0, %s112
      %s130 = sphi 0, %s130
      %s132 = sphi 0, %s130
      %s133 = sphi 0, %s132
      %s147 = sphi 0, %s133
      %s151 = sphi 0, %s151
      %s153 = sphi 0, %s151
      %s154 = sphi 0, %s153
      %s168 = sphi 0, %s154
      %s172 = sphi 0, %s172
      %s174 = sphi 0, %s172
      %s175 = sphi 0, %s174
      %s189 = sphi 0, %s175
      %s193 = sphi 0, %s193
      %s195 = sphi 0, %s193
      %s196 = sphi 0, %s195
      %s210 = sphi 0, %s196
      %s214 = sphi 0, %s214
      %s216 = sphi 0, %s214
      %s217 = sphi 0, %s216
      %s231 = sphi 0, %s217
      %s237 = sphi 0, %s239
      %s240 = sphi 0, %s237
      %s241 = sphi 0, %s240
      %s257 = sphi 0, %s241
      %s263 = sphi 0, %s265
      %s266 = sphi 0, %s263
      %s267 = sphi 0, %s266
      %s283 = sphi 0, %s267
    $region4: #{gray_scott_forward.1} parent=1 // loop_header_branch
      %26 = sbr.rel (%p24) target = $region8
    $region5: #{gray_scott_forward.1} parent=1 // loop_body
      %s28 = ssub.s32 %s23, 1
      %s29 = ssub.s32 %s23, 2
      %s30 = sadd.s32 %s23, 1
      %s31 = ssub.s32 %s23, %s30
      %p32 = scmp.eq.s32.totalorder %s31, 0
      %s34 = sadd.s32 %s33, 1
      %s35 = scalar_select %p32, %s33, %s34
      %p38 = pneg %p32
      %p39 = scmp.eq.s32.totalorder %s23, 1
      %p40 = por %p38, %p39
      %p41 = scmp.ne.s32.totalorder %s33, %s36
      %p42 = scmp.eq.s32.totalorder %s23, 0
      %p43 = por %p41, %p42
      %p44 = scmp.ne.s32.totalorder %s33, %s36
      %p45 = scmp.eq.s32.totalorder %s28, 1
      %p46 = por %p44, %p45
      %p47 = scmp.ne.s32.totalorder %s36, %s37
      %p48 = scmp.eq.s32.totalorder %s28, 0
      %p49 = por %p47, %p48
      %p50 = scmp.ne.s32.totalorder %s36, %s37
      %p51 = scmp.eq.s32.totalorder %s29, 1
      %p52 = por %p50, %p51
      %p54 = scmp.ne.s32.totalorder %s37, %s53
      %p55 = scmp.eq.s32.totalorder %s29, 0
      %p56 = por %p54, %p55
      %s57 = ssub.s32 %s23, %s30
      %p58 = scmp.eq.s32.totalorder %s57, 0
      %s60 = sadd.s32 %s59, 1
      %s61 = scalar_select %p58, %s59, %s60
      %p64 = pneg %p58
      %p65 = scmp.eq.s32.totalorder %s23, 1
      %p66 = por %p64, %p65
      %p67 = scmp.ne.s32.totalorder %s59, %s62
      %p68 = scmp.eq.s32.totalorder %s23, 0
      %p69 = por %p67, %p68
      %p70 = scmp.ne.s32.totalorder %s59, %s62
      %p71 = scmp.eq.s32.totalorder %s28, 1
      %p72 = por %p70, %p71
      %p73 = scmp.ne.s32.totalorder %s62, %s63
      %p74 = scmp.eq.s32.totalorder %s28, 0
      %p75 = por %p73, %p74
      %p76 = scmp.ne.s32.totalorder %s62, %s63
      %p77 = scmp.eq.s32.totalorder %s29, 1
      %p78 = por %p76, %p77
      %p80 = scmp.ne.s32.totalorder %s63, %s79
      %p81 = scmp.eq.s32.totalorder %s29, 0
      %p82 = por %p80, %p81
      %s83 = ssub.s32 %s23, %s30
      %p84 = scmp.eq.s32.totalorder %s83, 0
      %s86 = sadd.s32 %s85, 1
      %s87 = scalar_select %p84, %s85, %s86
      %p90 = pneg %p84
      %p91 = scmp.eq.s32.totalorder %s23, 1
      %p92 = por %p90, %p91
      %p93 = scmp.ne.s32.totalorder %s85, %s88
      %p94 = scmp.eq.s32.totalorder %s23, 0
      %p95 = por %p93, %p94
      %p96 = scmp.ne.s32.totalorder %s85, %s88
      %p97 = scmp.eq.s32.totalorder %s28, 1
      %p98 = por %p96, %p97
      %p99 = scmp.ne.s32.totalorder %s88, %s89
      %p100 = scmp.eq.s32.totalorder %s28, 0
      %p101 = por %p99, %p100
      %p102 = scmp.ne.s32.totalorder %s88, %s89
      %p103 = scmp.eq.s32.totalorder %s29, 1
      %p104 = por %p102, %p103
      %p106 = scmp.ne.s32.totalorder %s89, %s105
      %p107 = scmp.eq.s32.totalorder %s29, 0
      %p108 = por %p106, %p107
      %s110 = sadd.s32 %s109, 1
      %p113 = scmp.eq.s32.totalorder %s23, 1
      %p114 = scmp.ne.s32.totalorder %s109, %s111
      %p115 = scmp.eq.s32.totalorder %s23, 0
      %p116 = por %p114, %p115
      %p117 = scmp.ne.s32.totalorder %s109, %s111
      %p118 = scmp.eq.s32.totalorder %s28, 1
      %p119 = por %p117, %p118
      %p120 = scmp.ne.s32.totalorder %s111, %s112
      %p121 = scmp.eq.s32.totalorder %s28, 0
      %p122 = por %p120, %p121
      %p123 = scmp.ne.s32.totalorder %s111, %s112
      %p124 = scmp.eq.s32.totalorder %s29, 1
      %p125 = por %p123, %p124
      %p127 = scmp.ne.s32.totalorder %s112, %s126
      %p128 = scmp.eq.s32.totalorder %s29, 0
      %p129 = por %p127, %p128
      %s131 = sadd.s32 %s130, 1
      %p134 = scmp.eq.s32.totalorder %s23, 1
      %p135 = scmp.ne.s32.totalorder %s130, %s132
      %p136 = scmp.eq.s32.totalorder %s23, 0
      %p137 = por %p135, %p136
      %p138 = scmp.ne.s32.totalorder %s130, %s132
      %p139 = scmp.eq.s32.totalorder %s28, 1
      %p140 = por %p138, %p139
      %p141 = scmp.ne.s32.totalorder %s132, %s133
      %p142 = scmp.eq.s32.totalorder %s28, 0
      %p143 = por %p141, %p142
      %p144 = scmp.ne.s32.totalorder %s132, %s133
      %p145 = scmp.eq.s32.totalorder %s29, 1
      %p146 = por %p144, %p145
      %p148 = scmp.ne.s32.totalorder %s133, %s147
      %p149 = scmp.eq.s32.totalorder %s29, 0
      %p150 = por %p148, %p149
      %s152 = sadd.s32 %s151, 1
      %p155 = scmp.eq.s32.totalorder %s23, 1
      %p156 = scmp.ne.s32.totalorder %s151, %s153
      %p157 = scmp.eq.s32.totalorder %s23, 0
      %p158 = por %p156, %p157
      %p159 = scmp.ne.s32.totalorder %s151, %s153
      %p160 = scmp.eq.s32.totalorder %s28, 1
      %p161 = por %p159, %p160
      %p162 = scmp.ne.s32.totalorder %s153, %s154
      %p163 = scmp.eq.s32.totalorder %s28, 0
      %p164 = por %p162, %p163
      %p165 = scmp.ne.s32.totalorder %s153, %s154
      %p166 = scmp.eq.s32.totalorder %s29, 1
      %p167 = por %p165, %p166
      %p169 = scmp.ne.s32.totalorder %s154, %s168
      %p170 = scmp.eq.s32.totalorder %s29, 0
      %p171 = por %p169, %p170
      %s173 = sadd.s32 %s172, 1
      %p176 = scmp.eq.s32.totalorder %s23, 1
      %p177 = scmp.ne.s32.totalorder %s172, %s174
      %p178 = scmp.eq.s32.totalorder %s23, 0
      %p179 = por %p177, %p178
      %p180 = scmp.ne.s32.totalorder %s172, %s174
      %p181 = scmp.eq.s32.totalorder %s28, 1
      %p182 = por %p180, %p181
      %p183 = scmp.ne.s32.totalorder %s174, %s175
      %p184 = scmp.eq.s32.totalorder %s28, 0
      %p185 = por %p183, %p184
      %p186 = scmp.ne.s32.totalorder %s174, %s175
      %p187 = scmp.eq.s32.totalorder %s29, 1
      %p188 = por %p186, %p187
      %p190 = scmp.ne.s32.totalorder %s175, %s189
      %p191 = scmp.eq.s32.totalorder %s29, 0
      %p192 = por %p190, %p191
      %s194 = sadd.s32 %s193, 1
      %p197 = scmp.eq.s32.totalorder %s23, 1
      %p198 = scmp.ne.s32.totalorder %s193, %s195
      %p199 = scmp.eq.s32.totalorder %s23, 0
      %p200 = por %p198, %p199
      %p201 = scmp.ne.s32.totalorder %s193, %s195
      %p202 = scmp.eq.s32.totalorder %s28, 1
      %p203 = por %p201, %p202
      %p204 = scmp.ne.s32.totalorder %s195, %s196
      %p205 = scmp.eq.s32.totalorder %s28, 0
      %p206 = por %p204, %p205
      %p207 = scmp.ne.s32.totalorder %s195, %s196
      %p208 = scmp.eq.s32.totalorder %s29, 1
      %p209 = por %p207, %p208
      %p211 = scmp.ne.s32.totalorder %s196, %s210
      %p212 = scmp.eq.s32.totalorder %s29, 0
      %p213 = por %p211, %p212
      %s215 = sadd.s32 %s214, 1
      %p218 = scmp.eq.s32.totalorder %s23, 1
      %p219 = scmp.ne.s32.totalorder %s214, %s216
      %p220 = scmp.eq.s32.totalorder %s23, 0
      %p221 = por %p219, %p220
      %p222 = scmp.ne.s32.totalorder %s214, %s216
      %p223 = scmp.eq.s32.totalorder %s28, 1
      %p224 = por %p222, %p223
      %p225 = scmp.ne.s32.totalorder %s216, %s217
      %p226 = scmp.eq.s32.totalorder %s28, 0
      %p227 = por %p225, %p226
      %p228 = scmp.ne.s32.totalorder %s216, %s217
      %p229 = scmp.eq.s32.totalorder %s29, 1
      %p230 = por %p228, %p229
      %p232 = scmp.ne.s32.totalorder %s217, %s231
      %p233 = scmp.eq.s32.totalorder %s29, 0
      %p234 = por %p232, %p233
      %s235 = ssub.s32 %s23, %s30
      %p236 = scmp.eq.s32.totalorder %s235, 0
      %s238 = sadd.s32 %s237, 1
      %s239 = scalar_select %p236, %s237, %s238
      %p242 = pneg %p236
      %p243 = scmp.eq.s32.totalorder %s23, 1
      %p244 = por %p242, %p243
      %p245 = scmp.ne.s32.totalorder %s237, %s240
      %p246 = scmp.eq.s32.totalorder %s23, 0
      %p247 = por %p245, %p246
      %p248 = scmp.ne.s32.totalorder %s237, %s240
      %p249 = scmp.eq.s32.totalorder %s28, 1
      %p250 = por %p248, %p249
      %p251 = scmp.ne.s32.totalorder %s240, %s241
      %p252 = scmp.eq.s32.totalorder %s28, 0
      %p253 = por %p251, %p252
      %p254 = scmp.ne.s32.totalorder %s240, %s241
      %p255 = scmp.eq.s32.totalorder %s29, 1
      %p256 = por %p254, %p255
      %p258 = scmp.ne.s32.totalorder %s241, %s257
      %p259 = scmp.eq.s32.totalorder %s29, 0
      %p260 = por %p258, %p259
      %s261 = ssub.s32 %s23, %s30
      %p262 = scmp.eq.s32.totalorder %s261, 0
      %s264 = sadd.s32 %s263, 1
      %s265 = scalar_select %p262, %s263, %s264
      %p268 = pneg %p262
      %p269 = scmp.eq.s32.totalorder %s23, 1
      %p270 = por %p268, %p269
      %p271 = scmp.ne.s32.totalorder %s263, %s266
      %p272 = scmp.eq.s32.totalorder %s23, 0
      %p273 = por %p271, %p272
      %p274 = scmp.ne.s32.totalorder %s263, %s266
      %p275 = scmp.eq.s32.totalorder %s28, 1
      %p276 = por %p274, %p275
      %p277 = scmp.ne.s32.totalorder %s266, %s267
      %p278 = scmp.eq.s32.totalorder %s28, 0
      %p279 = por %p277, %p278
      %p280 = scmp.ne.s32.totalorder %s266, %s267
      %p281 = scmp.eq.s32.totalorder %s29, 1
      %p282 = por %p280, %p281
      %p284 = scmp.ne.s32.totalorder %s267, %s283
      %p285 = scmp.eq.s32.totalorder %s29, 0
      %p286 = por %p284, %p285
      %p287 = scmp.le.s32.totalorder 1, %s23
      %p288 = scmp.lt.s32.totalorder %s23, 3
      %p289 = pnand %p287, %p288
      %p290 = pneg %p289
      // Predicated region
      $region9: #{gray_scott_forward.1} parent=5 // pred_check
        _
      $region10: #{gray_scott_forward.1} parent=5 // pred_check_branch
        %292 = sbr.rel (%p289) target = $region12
      $region11: #{gray_scott_forward.1} parent=5 // pred_region
        %s293 = ssub.s32 %s23, 1
        // Predicated region
        $region13: #{gray_scott_forward.1} parent=11 // pred_check
          %p294 = pneg %p122
        $region14: #{gray_scott_forward.1} parent=11 // pred_check_branch
          %296 = sbr.rel (%p294) target = $region16
        $region15: #{gray_scott_forward.1} parent=11 // pred_region
          _
        $region16: #{gray_scott_forward.1} parent=11 // pred_fallthru
          _
        // Predicated region
        $region17: #{gray_scott_forward.1} parent=11 // pred_check
          %p297 = pneg %p143
        $region18: #{gray_scott_forward.1} parent=11 // pred_check_branch
          %299 = sbr.rel (%p297) target = $region20
        $region19: #{gray_scott_forward.1} parent=11 // pred_region
          _
        $region20: #{gray_scott_forward.1} parent=11 // pred_fallthru
          _
        // Predicated region
        $region21: #{gray_scott_forward.1} parent=11 // pred_check
          %p300 = pneg %p164
        $region22: #{gray_scott_forward.1} parent=11 // pred_check_branch
          %302 = sbr.rel (%p300) target = $region24
        $region23: #{gray_scott_forward.1} parent=11 // pred_region
          _
        $region24: #{gray_scott_forward.1} parent=11 // pred_fallthru
          _
        // Predicated region
        $region25: #{gray_scott_forward.1} parent=11 // pred_check
          %p303 = pneg %p185
        $region26: #{gray_scott_forward.1} parent=11 // pred_check_branch
          %305 = sbr.rel (%p303) target = $region28
        $region27: #{gray_scott_forward.1} parent=11 // pred_region
          _
        $region28: #{gray_scott_forward.1} parent=11 // pred_fallthru
          _
        // Predicated region
        $region29: #{gray_scott_forward.1} parent=11 // pred_check
          %p306 = pneg %p206
        $region30: #{gray_scott_forward.1} parent=11 // pred_check_branch
          %308 = sbr.rel (%p306) target = $region32
        $region31: #{gray_scott_forward.1} parent=11 // pred_region
          _
        $region32: #{gray_scott_forward.1} parent=11 // pred_fallthru
          _
        // Predicated region
        $region33: #{gray_scott_forward.1} parent=11 // pred_check
          %p309 = pneg %p227
        $region34: #{gray_scott_forward.1} parent=11 // pred_check_branch
          %311 = sbr.rel (%p309) target = $region36
        $region35: #{gray_scott_forward.1} parent=11 // pred_region
          _
        $region36: #{gray_scott_forward.1} parent=11 // pred_fallthru
          _
      $region12: #{gray_scott_forward.1} parent=5 // pred_fallthru
        _
      %p312 = scmp.lt.s32.totalorder %s23, 2
      // Predicated region
      $region37: #{gray_scott_forward.1} parent=5 // pred_check
        %p313 = pneg %p312
      $region38: #{gray_scott_forward.1} parent=5 // pred_check_branch
        %315 = sbr.rel (%p313) target = $region40
      $region39: #{gray_scott_forward.1} parent=5 // pred_region
        // Predicated region
        $region41: #{gray_scott_forward.1} parent=39 // pred_check
          %p316 = pneg %p43
        $region42: #{gray_scott_forward.1} parent=39 // pred_check_branch
          %318 = sbr.rel (%p316) target = $region44
        $region43: #{gray_scott_forward.1} parent=39 // pred_region
          %s319 = smul.u32 4, %s23
          %p320 = scmp.lt.s32.totalorder %s319, 7
          %s321 = scalar_select %p320, %s319, 7
          %s322 = scalar_lea.vmem %s0, %s321
          %s323 = smul.u32 4, %s23
        $region44: #{gray_scott_forward.1} parent=39 // pred_fallthru
          _
        // Predicated region
        $region45: #{gray_scott_forward.1} parent=39 // pred_check
          %p324 = pneg %p69
        $region46: #{gray_scott_forward.1} parent=39 // pred_check_branch
          %326 = sbr.rel (%p324) target = $region48
        $region47: #{gray_scott_forward.1} parent=39 // pred_region
          %s327 = smul.u32 4, %s23
          %p328 = scmp.lt.s32.totalorder %s327, 7
          %s329 = scalar_select %p328, %s327, 7
          %s330 = scalar_lea.vmem %s1, %s329
          %s331 = smul.u32 4, %s23
        $region48: #{gray_scott_forward.1} parent=39 // pred_fallthru
          _
        // Predicated region
        $region49: #{gray_scott_forward.1} parent=39 // pred_check
          %p332 = pneg %p95
        $region50: #{gray_scott_forward.1} parent=39 // pred_check_branch
          %334 = sbr.rel (%p332) target = $region52
        $region51: #{gray_scott_forward.1} parent=39 // pred_region
          %s335 = smul.u32 4, %s23
          %p336 = scmp.lt.s32.totalorder %s335, 7
          %s337 = scalar_select %p336, %s335, 7
          %s338 = scalar_lea.vmem %s2, %s337
          %s339 = smul.u32 4, %s23
        $region52: #{gray_scott_forward.1} parent=39 // pred_fallthru
          _
      $region40: #{gray_scott_forward.1} parent=5 // pred_fallthru
        _
      %p340 = scmp.le.s32.totalorder 1, %s23
      %p341 = scmp.lt.s32.totalorder %s23, 3
      %p342 = pnand %p340, %p341
      %p343 = pneg %p342
      // Predicated region
      $region53: #{gray_scott_forward.1} parent=5 // pred_check
        _
      $region54: #{gray_scott_forward.1} parent=5 // pred_check_branch
        %345 = sbr.rel (%p342) target = $region56
      $region55: #{gray_scott_forward.1} parent=5 // pred_region
        %s346 = ssub.s32 %s23, 1
        %s347 = smul.u32 4, %s28
        %p348 = scmp.lt.s32.totalorder %s347, 7
        %s349 = scalar_select %p348, %s347, 7
        %s350 = scalar_lea.vmem %s0, %s349
        %p351 = pneg %p49
        %p352 = pneg %p46
        %s353 = smul.u32 4, %s28
        %p354 = scmp.lt.s32.totalorder %s353, 7
        %s355 = scalar_select %p354, %s353, 7
        %s356 = scalar_lea.vmem %s1, %s355
        %p357 = pneg %p75
        %p358 = pneg %p72
        %s359 = smul.u32 4, %s28
        %p360 = scmp.lt.s32.totalorder %s359, 7
        %s361 = scalar_select %p360, %s359, 7
        %s362 = scalar_lea.vmem %s2, %s361
        %p363 = pneg %p101
        %p364 = pneg %p98
        %p365 = pneg %p122
        %p366 = pneg %p119
        %p367 = pneg %p143
        %p368 = pneg %p140
        %p369 = pneg %p164
        %p370 = pneg %p161
        %p371 = pneg %p185
        %p372 = pneg %p182
        %p373 = pneg %p206
        %p374 = pneg %p203
        %p375 = pneg %p227
        %p376 = pneg %p224
        %p377 = pneg %p253
        %p378 = pneg %p250
        %s379 = sand.u32 %s240, 1
        %s380 = scalar_lea.sflag [#allocation3], %s379
        %s381 = sand.u32 %s240, 1
        %s382 = smul.addr %s381, 4
        %s383 = scalar_lea.vmem [#allocation2], %s382
        %p384 = pneg %p279
        %p385 = pneg %p276
        %s386 = sand.u32 %s266, 1
        %s387 = scalar_lea.sflag [#allocation5], %s386
        %s388 = sand.u32 %s266, 1
        %s389 = smul.addr %s388, 4
        %s390 = scalar_lea.vmem [#allocation4], %s389
        %s391 = smul.u32 4, %s28
        %p392 = scmp.lt.s32.totalorder %s391, 7
        %s393 = scalar_select %p392, %s391, 7
        %s394 = scalar_lea.vmem %s0, %s393
        %s395 = smul.u32 4, %s28
        %s396 = smul.u32 4, %s28
        %p397 = scmp.lt.s32.totalorder %s396, 7
        %s398 = scalar_select %p397, %s396, 7
        %s399 = scalar_lea.vmem %s1, %s398
        %s400 = smul.u32 4, %s28
        %s401 = smul.u32 4, %s28
        %p402 = scmp.lt.s32.totalorder %s401, 7
        %s403 = scalar_select %p402, %s401, 7
        %s404 = scalar_lea.vmem %s2, %s403
        %s405 = smul.u32 4, %s28
        %s406 = smul.u32 4, %s28
        %s407 = smul.u32 4, %s28
        %v408 = vld [vmem:[%s394] sm:$0xf]
        %v409 = vld [vmem:[%s399] sm:$0xf]
        %v410 = vld [vmem:[%s404] sm:$0xf]
        %v412 = vlaneseq
        %v413 = vshrl.u32 %v412, 7
        %v414 = vsub.s32 0, %v413
        %v415 = vrot.slane %v408, %v414
        %v416 = vlaneseq
        %v417 = vshrl.u32 %v416, 7
        %v418 = vsub.s32 1, %v417
        %v419 = vrot.slane %v408, %v418
        %v420 = vlaneseq
        %v421 = vshrl.u32 %v420, 7
        %v422 = vsub.s32 2, %v421
        %v423 = vrot.slane %v408, %v422
        %v424 = vlaneseq
        %v425 = vshrl.u32 %v424, 7
        %v426 = vsub.s32 3, %v425
        %v427 = vrot.slane %v408, %v426
        %v433 = vlaneseq
        %v434 = vshrl.u32 %v433, 7
        %v435 = vsub.s32 0, %v434
        %v436 = vrot.slane %v409, %v435
        %v437 = vlaneseq
        %v438 = vshrl.u32 %v437, 7
        %v439 = vsub.s32 1, %v438
        %v440 = vrot.slane %v409, %v439
        %v441 = vlaneseq
        %v442 = vshrl.u32 %v441, 7
        %v443 = vsub.s32 2, %v442
        %v444 = vrot.slane %v409, %v443
        %v445 = vlaneseq
        %v446 = vshrl.u32 %v445, 7
        %v447 = vsub.s32 3, %v446
        %v448 = vrot.slane %v409, %v447
        %v454 = vlaneseq
        %v455 = vshrl.u32 %v454, 7
        %v456 = vsub.s32 0, %v455
        %v457 = vrot.slane %v410, %v456
        %v458 = vlaneseq
        %v459 = vshrl.u32 %v458, 7
        %v460 = vsub.s32 1, %v459
        %v461 = vrot.slane %v410, %v460
        %v462 = vlaneseq
        %v463 = vshrl.u32 %v462, 7
        %v464 = vsub.s32 2, %v463
        %v465 = vrot.slane %v410, %v464
        %v466 = vlaneseq
        %v467 = vshrl.u32 %v466, 7
        %v468 = vsub.s32 3, %v467
        %v469 = vrot.slane %v410, %v468
        %vm474 = vcmask 1040384
        %v475 = vsel %vm474, %v415, %v436
        %v476 = vsel %vm474, %v419, %v440
        %v477 = vsel %vm474, %v423, %v444
        %v478 = vsel %vm474, %v427, %v448
        %vm479 = vcmask 1041408
        %v480 = vsel %vm479, %v475, %v457
        %v481 = vsel %vm479, %v476, %v461
        %v482 = vsel %vm479, %v477, %v465
        %v483 = vsel %vm479, %v478, %v469
        %v484 = vld [vmem:[%s3] sm:$0xff]
        %v485 = vld [vmem:[%s3 + $0x8] sm:$0xff]
        %v486 = vld [vmem:[%s3 + $0x10] sm:$0xff]
        %v487 = vld [vmem:[%s4] sm:$0xff]
        %v488 = vld [vmem:[%s4 + $0x8] sm:$0xff]
        %v489 = vld [vmem:[%s4 + $0x10] sm:$0xff]
        %491 = vset.pattern.permute.xlu0 0
        %492 = vperm.xlu0 %491, %v487
        %v493 = vpop.permute.xlu0 %492
        %496 = vset.pattern.permute.xlu0 0
        %497 = vperm.xlu0 %496, %v488
        %v498 = vpop.permute.xlu0 %497
        %501 = vset.pattern.permute.xlu0 0
        %502 = vperm.xlu0 %501, %v489
        %v503 = vpop.permute.xlu0 %502
        %vm505 = vcmask 23552
        %v507 = vsel %vm505, %v484, 0
        %v510 = vsel %vm505, %v485, 0
        %v513 = vsel %vm505, %v486, 0
        %vm515 = vcmask 1042432
        %v517 = vsel %vm515, %v480, 0
        %v520 = vsel %vm515, %v481, 0
        %v523 = vsel %vm515, %v482, 0
        %v526 = vsel %vm515, %v483, 0
        %528 = vmatprep.subr.mxu0 %v520
        %529 = vmatpush1.msra.mxu0 %v517
        %530 = vmatprep.subr.mxu0 0.0
        %531 = vmatpush1.msra.mxu0 0.0
        %532 = vmatprep.subr.mxu0 0.0
        %533 = vmatpush1.msra.mxu0 0.0
        %534 = vmatprep.subr.mxu0 0.0
        %535 = vmatpush1.msra.mxu0 0.0
        %536 = vmatprep.subr.mxu0 0.0
        %537 = vmatpush1.msra.mxu0 0.0
        %538 = vmatprep.subr.mxu0 0.0
        %539 = vmatpush1.msra.mxu0 0.0
        %540 = vmatprep.subr.mxu0 0.0
        %541 = vmatpush1.msra.mxu0 0.0
        %542 = vmatprep.subr.mxu0 0.0
        %543 = vmatpush1.msra.mxu0 0.0
        %544 = vmatprep.subr.mxu0 0.0
        %545 = vmatpush1.msra.mxu0 0.0
        %546 = vmatprep.subr.mxu0 0.0
        %547 = vmatpush1.msra.mxu0 0.0
        %548 = vmatprep.subr.mxu0 0.0
        %549 = vmatpush1.msra.mxu0 0.0
        %550 = vmatprep.subr.mxu0 0.0
        %551 = vmatpush1.msra.mxu0 0.0
        %552 = vmatprep.subr.mxu0 0.0
        %553 = vmatpush1.msra.mxu0 0.0
        %554 = vmatprep.subr.mxu0 0.0
        %555 = vmatpush1.msra.mxu0 0.0
        %556 = vmatprep.subr.mxu0 0.0
        %557 = vmatpush1.msra.mxu0 0.0
        %558 = vmatprep.subr.mxu0 0.0
        %559 = vmatpush1.msra.mxu0 0.0
        %560 = vmatprep.subr.mxu0 0.0
        %561 = vmatpush1.msra.mxu0 0.0
        %562 = vmatprep.subr.mxu0 0.0
        %563 = vmatpush1.msra.mxu0 0.0
        %564 = vmatprep.subr.mxu0 0.0
        %565 = vmatpush1.msra.mxu0 0.0
        %566 = vmatprep.subr.mxu0 0.0
        %567 = vmatpush1.msra.mxu0 0.0
        %568 = vmatprep.subr.mxu0 0.0
        %569 = vmatpush1.msra.mxu0 0.0
        %570 = vmatprep.subr.mxu0 0.0
        %571 = vmatpush1.msra.mxu0 0.0
        %572 = vmatprep.subr.mxu0 0.0
        %573 = vmatpush1.msra.mxu0 0.0
        %574 = vmatprep.subr.mxu0 0.0
        %575 = vmatpush1.msra.mxu0 0.0
        %576 = vmatprep.subr.mxu0 0.0
        %577 = vmatpush1.msra.mxu0 0.0
        %578 = vmatprep.subr.mxu0 0.0
        %579 = vmatpush1.msra.mxu0 0.0
        %580 = vmatprep.subr.mxu0 0.0
        %581 = vmatpush1.msra.mxu0 0.0
        %582 = vmatprep.subr.mxu0 0.0
        %583 = vmatpush1.msra.mxu0 0.0
        %584 = vmatprep.subr.mxu0 0.0
        %585 = vmatpush1.msra.mxu0 0.0
        %586 = vmatprep.subr.mxu0 0.0
        %587 = vmatpush1.msra.mxu0 0.0
        %588 = vmatprep.subr.mxu0 0.0
        %589 = vmatpush1.msra.mxu0 0.0
        %590 = vmatprep.subr.mxu0 0.0
        %591 = vmatpush1.msra.mxu0 0.0
        %592 = vmatprep.mubr.f32.mxu0 0.0
        %593 = vmatmul.mubr.f32.gmra.mrb[0].mxu0 %v507
        %v594 = vpop.f32.mrb[0].mxu0
        %v595 = vadd.f32 %v493, %v594
        %v596 = vpop.f32.mrb[0].mxu0
        %v597 = vadd.f32 %v493, %v596
        %598 = vmatprep.mubr.f32.mxu0 0.0
        %599 = vmatmul.mubr.f32.gmra.mrb[0].mxu0 %v510
        %v600 = vpop.f32.mrb[0].mxu0
        %v601 = vadd.f32 %v498, %v600
        %v602 = vpop.f32.mrb[0].mxu0
        %v603 = vadd.f32 %v498, %v602
        %604 = vmatprep.mubr.f32.mxu0 0.0
        %605 = vmatmul.mubr.f32.gmra.mrb[0].mxu0 %v513
        %v606 = vpop.f32.mrb[0].mxu0
        %v607 = vadd.f32 %v503, %v606
        %v608 = vpop.f32.mrb[0].mxu0
        %v609 = vadd.f32 %v503, %v608
        %610 = vdwg.mxu0
        %611 = vmatprep.subr.mxu0 %v526
        %612 = vmatpush1.msra.mxu0 %v523
        %613 = vmatprep.subr.mxu0 0.0
        %614 = vmatpush1.msra.mxu0 0.0
        %615 = vmatprep.subr.mxu0 0.0
        %616 = vmatpush1.msra.mxu0 0.0
        %617 = vmatprep.subr.mxu0 0.0
        %618 = vmatpush1.msra.mxu0 0.0
        %619 = vmatprep.subr.mxu0 0.0
        %620 = vmatpush1.msra.mxu0 0.0
        %621 = vmatprep.subr.mxu0 0.0
        %622 = vmatpush1.msra.mxu0 0.0
        %623 = vmatprep.subr.mxu0 0.0
        %624 = vmatpush1.msra.mxu0 0.0
        %625 = vmatprep.subr.mxu0 0.0
        %626 = vmatpush1.msra.mxu0 0.0
        %627 = vmatprep.subr.mxu0 0.0
        %628 = vmatpush1.msra.mxu0 0.0
        %629 = vmatprep.subr.mxu0 0.0
        %630 = vmatpush1.msra.mxu0 0.0
        %631 = vmatprep.subr.mxu0 0.0
        %632 = vmatpush1.msra.mxu0 0.0
        %633 = vmatprep.subr.mxu0 0.0
        %634 = vmatpush1.msra.mxu0 0.0
        %635 = vmatprep.subr.mxu0 0.0
        %636 = vmatpush1.msra.mxu0 0.0
        %637 = vmatprep.subr.mxu0 0.0
        %638 = vmatpush1.msra.mxu0 0.0
        %639 = vmatprep.subr.mxu0 0.0
        %640 = vmatpush1.msra.mxu0 0.0
        %641 = vmatprep.subr.mxu0 0.0
        %642 = vmatpush1.msra.mxu0 0.0
        %643 = vmatprep.subr.mxu0 0.0
        %644 = vmatpush1.msra.mxu0 0.0
        %645 = vmatprep.subr.mxu0 0.0
        %646 = vmatpush1.msra.mxu0 0.0
        %647 = vmatprep.subr.mxu0 0.0
        %648 = vmatpush1.msra.mxu0 0.0
        %649 = vmatprep.subr.mxu0 0.0
        %650 = vmatpush1.msra.mxu0 0.0
        %651 = vmatprep.subr.mxu0 0.0
        %652 = vmatpush1.msra.mxu0 0.0
        %653 = vmatprep.subr.mxu0 0.0
        %654 = vmatpush1.msra.mxu0 0.0
        %655 = vmatprep.subr.mxu0 0.0
        %656 = vmatpush1.msra.mxu0 0.0
        %657 = vmatprep.subr.mxu0 0.0
        %658 = vmatpush1.msra.mxu0 0.0
        %659 = vmatprep.subr.mxu0 0.0
        %660 = vmatpush1.msra.mxu0 0.0
        %661 = vmatprep.subr.mxu0 0.0
        %662 = vmatpush1.msra.mxu0 0.0
        %663 = vmatprep.subr.mxu0 0.0
        %664 = vmatpush1.msra.mxu0 0.0
        %665 = vmatprep.subr.mxu0 0.0
        %666 = vmatpush1.msra.mxu0 0.0
        %667 = vmatprep.subr.mxu0 0.0
        %668 = vmatpush1.msra.mxu0 0.0
        %669 = vmatprep.subr.mxu0 0.0
        %670 = vmatpush1.msra.mxu0 0.0
        %671 = vmatprep.subr.mxu0 0.0
        %672 = vmatpush1.msra.mxu0 0.0
        %673 = vmatprep.subr.mxu0 0.0
        %674 = vmatpush1.msra.mxu0 0.0
        %675 = vmatprep.mubr.f32.mxu0 0.0
        %676 = vmatmul.mubr.f32.gmra.mrb[0].mxu0 %v507
        %v677 = vpop.f32.mrb[0].mxu0
        %v678 = vadd.f32 %v493, %v677
        %v679 = vpop.f32.mrb[0].mxu0
        %v680 = vadd.f32 %v493, %v679
        %681 = vmatprep.mubr.f32.mxu0 0.0
        %682 = vmatmul.mubr.f32.gmra.mrb[0].mxu0 %v510
        %v683 = vpop.f32.mrb[0].mxu0
        %v684 = vadd.f32 %v498, %v683
        %v685 = vpop.f32.mrb[0].mxu0
        %v686 = vadd.f32 %v498, %v685
        %687 = vmatprep.mubr.f32.mxu0 0.0
        %688 = vmatmul.mubr.f32.gmra.mrb[0].mxu0 %v513
        %v689 = vpop.f32.mrb[0].mxu0
        %v690 = vadd.f32 %v503, %v689
        %v691 = vpop.f32.mrb[0].mxu0
        %v692 = vadd.f32 %v503, %v691
        %693 = vdwg.mxu0
        %v694 = vtanh.pop %v595
        %v695 = vtanh.pop %v597
        %v696 = vtanh.pop %v678
        %v697 = vtanh.pop %v680
        %v698 = vtanh.pop %v601
        %v699 = vtanh.pop %v603
        %v700 = vtanh.pop %v684
        %v701 = vtanh.pop %v686
        %v702 = vtanh.pop %v607
        %v703 = vtanh.pop %v609
        %v704 = vtanh.pop %v690
        %v705 = vtanh.pop %v692
        %v706 = vld [vmem:[%s5] sm:$0xff]
        %v707 = vld [vmem:[%s5 + $0x8] sm:$0xff]
        %v708 = vld [vmem:[%s5 + $0x10] sm:$0xff]
        %v709 = vld [vmem:[%s6] sm:$0xff]
        %v710 = vld [vmem:[%s6 + $0x8] sm:$0xff]
        %v711 = vld [vmem:[%s6 + $0x10] sm:$0xff]
        %713 = vset.pattern.permute.xlu0 0
        %714 = vperm.xlu0 %713, %v709
        %v715 = vpop.permute.xlu0 %714
        %718 = vset.pattern.permute.xlu0 0
        %719 = vperm.xlu0 %718, %v710
        %v720 = vpop.permute.xlu0 %719
        %723 = vset.pattern.permute.xlu0 0
        %724 = vperm.xlu0 %723, %v711
        %v725 = vpop.permute.xlu0 %724
        %vm727 = vcmask 195584
        %v729 = vsel %vm727, %v706, 0
        %v732 = vsel %vm727, %v707, 0
        %v735 = vsel %vm727, %v708, 0
        %737 = vmatprep.subr.mxu0 %v695
        %738 = vmatpush1.msra.mxu0 %v694
        %739 = vmatprep.subr.mxu0 %v699
        %740 = vmatpush1.msra.mxu0 %v698
        %741 = vmatprep.subr.mxu0 %v703
        %742 = vmatpush1.msra.mxu0 %v702
        %743 = vmatprep.subr.mxu0 0.0
        %744 = vmatpush1.msra.mxu0 0.0
        %745 = vmatprep.subr.mxu0 0.0
        %746 = vmatpush1.msra.mxu0 0.0
        %747 = vmatprep.subr.mxu0 0.0
        %748 = vmatpush1.msra.mxu0 0.0
        %749 = vmatprep.subr.mxu0 0.0
        %750 = vmatpush1.msra.mxu0 0.0
        %751 = vmatprep.subr.mxu0 0.0
        %752 = vmatpush1.msra.mxu0 0.0
        %753 = vmatprep.subr.mxu0 0.0
        %754 = vmatpush1.msra.mxu0 0.0
        %755 = vmatprep.subr.mxu0 0.0
        %756 = vmatpush1.msra.mxu0 0.0
        %757 = vmatprep.subr.mxu0 0.0
        %758 = vmatpush1.msra.mxu0 0.0
        %759 = vmatprep.subr.mxu0 0.0
        %760 = vmatpush1.msra.mxu0 0.0
        %761 = vmatprep.subr.mxu0 0.0
        %762 = vmatpush1.msra.mxu0 0.0
        %763 = vmatprep.subr.mxu0 0.0
        %764 = vmatpush1.msra.mxu0 0.0
        %765 = vmatprep.subr.mxu0 0.0
        %766 = vmatpush1.msra.mxu0 0.0
        %767 = vmatprep.subr.mxu0 0.0
        %768 = vmatpush1.msra.mxu0 0.0
        %769 = vmatprep.subr.mxu0 0.0
        %770 = vmatpush1.msra.mxu0 0.0
        %771 = vmatprep.subr.mxu0 0.0
        %772 = vmatpush1.msra.mxu0 0.0
        %773 = vmatprep.subr.mxu0 0.0
        %774 = vmatpush1.msra.mxu0 0.0
        %775 = vmatprep.subr.mxu0 0.0
        %776 = vmatpush1.msra.mxu0 0.0
        %777 = vmatprep.subr.mxu0 0.0
        %778 = vmatpush1.msra.mxu0 0.0
        %779 = vmatprep.subr.mxu0 0.0
        %780 = vmatpush1.msra.mxu0 0.0
        %781 = vmatprep.subr.mxu0 0.0
        %782 = vmatpush1.msra.mxu0 0.0
        %783 = vmatprep.subr.mxu0 0.0
        %784 = vmatpush1.msra.mxu0 0.0
        %785 = vmatprep.subr.mxu0 0.0
        %786 = vmatpush1.msra.mxu0 0.0
        %787 = vmatprep.subr.mxu0 0.0
        %788 = vmatpush1.msra.mxu0 0.0
        %789 = vmatprep.subr.mxu0 0.0
        %790 = vmatpush1.msra.mxu0 0.0
        %791 = vmatprep.subr.mxu0 0.0
        %792 = vmatpush1.msra.mxu0 0.0
        %793 = vmatprep.subr.mxu0 0.0
        %794 = vmatpush1.msra.mxu0 0.0
        %795 = vmatprep.subr.mxu0 0.0
        %796 = vmatpush1.msra.mxu0 0.0
        %797 = vmatprep.subr.mxu0 0.0
        %798 = vmatpush1.msra.mxu0 0.0
        %799 = vmatprep.subr.mxu0 0.0
        %800 = vmatpush1.msra.mxu0 0.0
        %801 = vmatprep.mubr.f32.mxu0 0.0
        %802 = vmatmul.mubr.f32.gmra.mrb[0].mxu0 %v729
        %v803 = vpop.f32.mrb[0].mxu0
        %v804 = vadd.f32 %v715, %v803
        %v805 = vpop.f32.mrb[0].mxu0
        %v806 = vadd.f32 %v715, %v805
        %807 = vmatprep.mubr.f32.mxu0 0.0
        %808 = vmatmul.mubr.f32.gmra.mrb[0].mxu0 %v732
        %v809 = vpop.f32.mrb[0].mxu0
        %v810 = vadd.f32 %v720, %v809
        %v811 = vpop.f32.mrb[0].mxu0
        %v812 = vadd.f32 %v720, %v811
        %813 = vmatprep.mubr.f32.mxu0 0.0
        %814 = vmatmul.mubr.f32.gmra.mrb[0].mxu0 %v735
        %v815 = vpop.f32.mrb[0].mxu0
        %v816 = vadd.f32 %v725, %v815
        %v817 = vpop.f32.mrb[0].mxu0
        %v818 = vadd.f32 %v725, %v817
        %819 = vdwg.mxu0
        %820 = vmatprep.subr.mxu0 %v697
        %821 = vmatpush1.msra.mxu0 %v696
        %822 = vmatprep.subr.mxu0 %v701
        %823 = vmatpush1.msra.mxu0 %v700
        %824 = vmatprep.subr.mxu0 %v705
        %825 = vmatpush1.msra.mxu0 %v704
        %826 = vmatprep.subr.mxu0 0.0
        %827 = vmatpush1.msra.mxu0 0.0
        %828 = vmatprep.subr.mxu0 0.0
        %829 = vmatpush1.msra.mxu0 0.0
        %830 = vmatprep.subr.mxu0 0.0
        %831 = vmatpush1.msra.mxu0 0.0
        %832 = vmatprep.subr.mxu0 0.0
        %833 = vmatpush1.msra.mxu0 0.0
        %834 = vmatprep.subr.mxu0 0.0
        %835 = vmatpush1.msra.mxu0 0.0
        %836 = vmatprep.subr.mxu0 0.0
        %837 = vmatpush1.msra.mxu0 0.0
        %838 = vmatprep.subr.mxu0 0.0
        %839 = vmatpush1.msra.mxu0 0.0
        %840 = vmatprep.subr.mxu0 0.0
        %841 = vmatpush1.msra.mxu0 0.0
        %842 = vmatprep.subr.mxu0 0.0
        %843 = vmatpush1.msra.mxu0 0.0
        %844 = vmatprep.subr.mxu0 0.0
        %845 = vmatpush1.msra.mxu0 0.0
        %846 = vmatprep.subr.mxu0 0.0
        %847 = vmatpush1.msra.mxu0 0.0
        %848 = vmatprep.subr.mxu0 0.0
        %849 = vmatpush1.msra.mxu0 0.0
        %850 = vmatprep.subr.mxu0 0.0
        %851 = vmatpush1.msra.mxu0 0.0
        %852 = vmatprep.subr.mxu0 0.0
        %853 = vmatpush1.msra.mxu0 0.0
        %854 = vmatprep.subr.mxu0 0.0
        %855 = vmatpush1.msra.mxu0 0.0
        %856 = vmatprep.subr.mxu0 0.0
        %857 = vmatpush1.msra.mxu0 0.0
        %858 = vmatprep.subr.mxu0 0.0
        %859 = vmatpush1.msra.mxu0 0.0
        %860 = vmatprep.subr.mxu0 0.0
        %861 = vmatpush1.msra.mxu0 0.0
        %862 = vmatprep.subr.mxu0 0.0
        %863 = vmatpush1.msra.mxu0 0.0
        %864 = vmatprep.subr.mxu0 0.0
        %865 = vmatpush1.msra.mxu0 0.0
        %866 = vmatprep.subr.mxu0 0.0
        %867 = vmatpush1.msra.mxu0 0.0
        %868 = vmatprep.subr.mxu0 0.0
        %869 = vmatpush1.msra.mxu0 0.0
        %870 = vmatprep.subr.mxu0 0.0
        %871 = vmatpush1.msra.mxu0 0.0
        %872 = vmatprep.subr.mxu0 0.0
        %873 = vmatpush1.msra.mxu0 0.0
        %874 = vmatprep.subr.mxu0 0.0
        %875 = vmatpush1.msra.mxu0 0.0
        %876 = vmatprep.subr.mxu0 0.0
        %877 = vmatpush1.msra.mxu0 0.0
        %878 = vmatprep.subr.mxu0 0.0
        %879 = vmatpush1.msra.mxu0 0.0
        %880 = vmatprep.subr.mxu0 0.0
        %881 = vmatpush1.msra.mxu0 0.0
        %882 = vmatprep.subr.mxu0 0.0
        %883 = vmatpush1.msra.mxu0 0.0
        %884 = vmatprep.mubr.f32.mxu0 0.0
        %885 = vmatmul.mubr.f32.gmra.mrb[0].mxu0 %v729
        %v886 = vpop.f32.mrb[0].mxu0
        %v887 = vadd.f32 %v715, %v886
        %v888 = vpop.f32.mrb[0].mxu0
        %v889 = vadd.f32 %v715, %v888
        %890 = vmatprep.mubr.f32.mxu0 0.0
        %891 = vmatmul.mubr.f32.gmra.mrb[0].mxu0 %v732
        %v892 = vpop.f32.mrb[0].mxu0
        %v893 = vadd.f32 %v720, %v892
        %v894 = vpop.f32.mrb[0].mxu0
        %v895 = vadd.f32 %v720, %v894
        %896 = vmatprep.mubr.f32.mxu0 0.0
        %897 = vmatmul.mubr.f32.gmra.mrb[0].mxu0 %v735
        %v898 = vpop.f32.mrb[0].mxu0
        %v899 = vadd.f32 %v725, %v898
        %v900 = vpop.f32.mrb[0].mxu0
        %v901 = vadd.f32 %v725, %v900
        %902 = vdwg.mxu0
        %v903 = vtanh.pop %v804
        %v904 = vtanh.pop %v806
        %v905 = vtanh.pop %v887
        %v906 = vtanh.pop %v889
        %v907 = vtanh.pop %v810
        %v908 = vtanh.pop %v812
        %v909 = vtanh.pop %v893
        %v910 = vtanh.pop %v895
        %v911 = vtanh.pop %v816
        %v912 = vtanh.pop %v818
        %v913 = vtanh.pop %v899
        %v914 = vtanh.pop %v901
        %s915 = scalar_lea.vmem %s5, 24
        %v916 = vld [vmem:[%s915] sm:$0xff]
        %v917 = vld [vmem:[%s915 + $0x8] sm:$0xff]
        %v918 = vld [vmem:[%s915 + $0x10] sm:$0xff]
        %s919 = scalar_lea.vmem %s6, 24
        %v920 = vld [vmem:[%s919] sm:$0xff]
        %v921 = vld [vmem:[%s919 + $0x8] sm:$0xff]
        %v922 = vld [vmem:[%s919 + $0x10] sm:$0xff]
        %924 = vset.pattern.permute.xlu0 0
        %925 = vperm.xlu0 %924, %v920
        %v926 = vpop.permute.xlu0 %925
        %929 = vset.pattern.permute.xlu0 0
        %930 = vperm.xlu0 %929, %v921
        %v931 = vpop.permute.xlu0 %930
        %934 = vset.pattern.permute.xlu0 0
        %935 = vperm.xlu0 %934, %v922
        %v936 = vpop.permute.xlu0 %935
        %v939 = vsel %vm727, %v916, 0
        %v942 = vsel %vm727, %v917, 0
        %v945 = vsel %vm727, %v918, 0
        %947 = vmatprep.subr.mxu0 %v904
        %948 = vmatpush1.msra.mxu0 %v903
        %949 = vmatprep.subr.mxu0 %v908
        %950 = vmatpush1.msra.mxu0 %v907
        %951 = vmatprep.subr.mxu0 %v912
        %952 = vmatpush1.msra.mxu0 %v911
        %953 = vmatprep.subr.mxu0 0.0
        %954 = vmatpush1.msra.mxu0 0.0
        %955 = vmatprep.subr.mxu0 0.0
        %956 = vmatpush1.msra.mxu0 0.0
        %957 = vmatprep.subr.mxu0 0.0
        %958 = vmatpush1.msra.mxu0 0.0
        %959 = vmatprep.subr.mxu0 0.0
        %960 = vmatpush1.msra.mxu0 0.0
        %961 = vmatprep.subr.mxu0 0.0
        %962 = vmatpush1.msra.mxu0 0.0
        %963 = vmatprep.subr.mxu0 0.0
        %964 = vmatpush1.msra.mxu0 0.0
        %965 = vmatprep.subr.mxu0 0.0
        %966 = vmatpush1.msra.mxu0 0.0
        %967 = vmatprep.subr.mxu0 0.0
        %968 = vmatpush1.msra.mxu0 0.0
        %969 = vmatprep.subr.mxu0 0.0
        %970 = vmatpush1.msra.mxu0 0.0
        %971 = vmatprep.subr.mxu0 0.0
        %972 = vmatpush1.msra.mxu0 0.0
        %973 = vmatprep.subr.mxu0 0.0
        %974 = vmatpush1.msra.mxu0 0.0
        %975 = vmatprep.subr.mxu0 0.0
        %976 = vmatpush1.msra.mxu0 0.0
        %977 = vmatprep.subr.mxu0 0.0
        %978 = vmatpush1.msra.mxu0 0.0
        %979 = vmatprep.subr.mxu0 0.0
        %980 = vmatpush1.msra.mxu0 0.0
        %981 = vmatprep.subr.mxu0 0.0
        %982 = vmatpush1.msra.mxu0 0.0
        %983 = vmatprep.subr.mxu0 0.0
        %984 = vmatpush1.msra.mxu0 0.0
        %985 = vmatprep.subr.mxu0 0.0
        %986 = vmatpush1.msra.mxu0 0.0
        %987 = vmatprep.subr.mxu0 0.0
        %988 = vmatpush1.msra.mxu0 0.0
        %989 = vmatprep.subr.mxu0 0.0
        %990 = vmatpush1.msra.mxu0 0.0
        %991 = vmatprep.subr.mxu0 0.0
        %992 = vmatpush1.msra.mxu0 0.0
        %993 = vmatprep.subr.mxu0 0.0
        %994 = vmatpush1.msra.mxu0 0.0
        %995 = vmatprep.subr.mxu0 0.0
        %996 = vmatpush1.msra.mxu0 0.0
        %997 = vmatprep.subr.mxu0 0.0
        %998 = vmatpush1.msra.mxu0 0.0
        %999 = vmatprep.subr.mxu0 0.0
        %1000 = vmatpush1.msra.mxu0 0.0
        %1001 = vmatprep.subr.mxu0 0.0
        %1002 = vmatpush1.msra.mxu0 0.0
        %1003 = vmatprep.subr.mxu0 0.0
        %1004 = vmatpush1.msra.mxu0 0.0
        %1005 = vmatprep.subr.mxu0 0.0
        %1006 = vmatpush1.msra.mxu0 0.0
        %1007 = vmatprep.subr.mxu0 0.0
        %1008 = vmatpush1.msra.mxu0 0.0
        %1009 = vmatprep.subr.mxu0 0.0
        %1010 = vmatpush1.msra.mxu0 0.0
        %1011 = vmatprep.mubr.f32.mxu0 0.0
        %1012 = vmatmul.mubr.f32.gmra.mrb[0].mxu0 %v939
        %v1013 = vpop.f32.mrb[0].mxu0
        %v1014 = vadd.f32 %v926, %v1013
        %v1015 = vpop.f32.mrb[0].mxu0
        %v1016 = vadd.f32 %v926, %v1015
        %1017 = vmatprep.mubr.f32.mxu0 0.0
        %1018 = vmatmul.mubr.f32.gmra.mrb[0].mxu0 %v942
        %v1019 = vpop.f32.mrb[0].mxu0
        %v1020 = vadd.f32 %v931, %v1019
        %v1021 = vpop.f32.mrb[0].mxu0
        %v1022 = vadd.f32 %v931, %v1021
        %1023 = vmatprep.mubr.f32.mxu0 0.0
        %1024 = vmatmul.mubr.f32.gmra.mrb[0].mxu0 %v945
        %v1025 = vpop.f32.mrb[0].mxu0
        %v1026 = vadd.f32 %v936, %v1025
        %v1027 = vpop.f32.mrb[0].mxu0
        %v1028 = vadd.f32 %v936, %v1027
        %1029 = vdwg.mxu0
        %1030 = vmatprep.subr.mxu0 %v906
        %1031 = vmatpush1.msra.mxu0 %v905
        %1032 = vmatprep.subr.mxu0 %v910
        %1033 = vmatpush1.msra.mxu0 %v909
        %1034 = vmatprep.subr.mxu0 %v914
        %1035 = vmatpush1.msra.mxu0 %v913
        %1036 = vmatprep.subr.mxu0 0.0
        %1037 = vmatpush1.msra.mxu0 0.0
        %1038 = vmatprep.subr.mxu0 0.0
        %1039 = vmatpush1.msra.mxu0 0.0
        %1040 = vmatprep.subr.mxu0 0.0
        %1041 = vmatpush1.msra.mxu0 0.0
        %1042 = vmatprep.subr.mxu0 0.0
        %1043 = vmatpush1.msra.mxu0 0.0
        %1044 = vmatprep.subr.mxu0 0.0
        %1045 = vmatpush1.msra.mxu0 0.0
        %1046 = vmatprep.subr.mxu0 0.0
        %1047 = vmatpush1.msra.mxu0 0.0
        %1048 = vmatprep.subr.mxu0 0.0
        %1049 = vmatpush1.msra.mxu0 0.0
        %1050 = vmatprep.subr.mxu0 0.0
        %1051 = vmatpush1.msra.mxu0 0.0
        %1052 = vmatprep.subr.mxu0 0.0
        %1053 = vmatpush1.msra.mxu0 0.0
        %1054 = vmatprep.subr.mxu0 0.0
        %1055 = vmatpush1.msra.mxu0 0.0
        %1056 = vmatprep.subr.mxu0 0.0
        %1057 = vmatpush1.msra.mxu0 0.0
        %1058 = vmatprep.subr.mxu0 0.0
        %1059 = vmatpush1.msra.mxu0 0.0
        %1060 = vmatprep.subr.mxu0 0.0
        %1061 = vmatpush1.msra.mxu0 0.0
        %1062 = vmatprep.subr.mxu0 0.0
        %1063 = vmatpush1.msra.mxu0 0.0
        %1064 = vmatprep.subr.mxu0 0.0
        %1065 = vmatpush1.msra.mxu0 0.0
        %1066 = vmatprep.subr.mxu0 0.0
        %1067 = vmatpush1.msra.mxu0 0.0
        %1068 = vmatprep.subr.mxu0 0.0
        %1069 = vmatpush1.msra.mxu0 0.0
        %1070 = vmatprep.subr.mxu0 0.0
        %1071 = vmatpush1.msra.mxu0 0.0
        %1072 = vmatprep.subr.mxu0 0.0
        %1073 = vmatpush1.msra.mxu0 0.0
        %1074 = vmatprep.subr.mxu0 0.0
        %1075 = vmatpush1.msra.mxu0 0.0
        %1076 = vmatprep.subr.mxu0 0.0
        %1077 = vmatpush1.msra.mxu0 0.0
        %1078 = vmatprep.subr.mxu0 0.0
        %1079 = vmatpush1.msra.mxu0 0.0
        %1080 = vmatprep.subr.mxu0 0.0
        %1081 = vmatpush1.msra.mxu0 0.0
        %1082 = vmatprep.subr.mxu0 0.0
        %1083 = vmatpush1.msra.mxu0 0.0
        %1084 = vmatprep.subr.mxu0 0.0
        %1085 = vmatpush1.msra.mxu0 0.0
        %1086 = vmatprep.subr.mxu0 0.0
        %1087 = vmatpush1.msra.mxu0 0.0
        %1088 = vmatprep.subr.mxu0 0.0
        %1089 = vmatpush1.msra.mxu0 0.0
        %1090 = vmatprep.subr.mxu0 0.0
        %1091 = vmatpush1.msra.mxu0 0.0
        %1092 = vmatprep.subr.mxu0 0.0
        %1093 = vmatpush1.msra.mxu0 0.0
        %1094 = vmatprep.mubr.f32.mxu0 0.0
        %1095 = vmatmul.mubr.f32.gmra.mrb[0].mxu0 %v939
        %v1096 = vpop.f32.mrb[0].mxu0
        %v1097 = vadd.f32 %v926, %v1096
        %v1098 = vpop.f32.mrb[0].mxu0
        %v1099 = vadd.f32 %v926, %v1098
        %1100 = vmatprep.mubr.f32.mxu0 0.0
        %1101 = vmatmul.mubr.f32.gmra.mrb[0].mxu0 %v942
        %v1102 = vpop.f32.mrb[0].mxu0
        %v1103 = vadd.f32 %v931, %v1102
        %v1104 = vpop.f32.mrb[0].mxu0
        %v1105 = vadd.f32 %v931, %v1104
        %1106 = vmatprep.mubr.f32.mxu0 0.0
        %1107 = vmatmul.mubr.f32.gmra.mrb[0].mxu0 %v945
        %v1108 = vpop.f32.mrb[0].mxu0
        %v1109 = vadd.f32 %v936, %v1108
        %v1110 = vpop.f32.mrb[0].mxu0
        %v1111 = vadd.f32 %v936, %v1110
        %1112 = vdwg.mxu0
        %v1113 = vtanh.pop %v1014
        %v1114 = vtanh.pop %v1016
        %v1115 = vtanh.pop %v1097
        %v1116 = vtanh.pop %v1099
        %v1117 = vtanh.pop %v1020
        %v1118 = vtanh.pop %v1022
        %v1119 = vtanh.pop %v1103
        %v1120 = vtanh.pop %v1105
        %v1121 = vtanh.pop %v1026
        %v1122 = vtanh.pop %v1028
        %v1123 = vtanh.pop %v1109
        %v1124 = vtanh.pop %v1111
        %s1125 = scalar_lea.vmem %s5, 48
        %v1126 = vld [vmem:[%s1125] sm:$0xff]
        %v1127 = vld [vmem:[%s1125 + $0x8] sm:$0xff]
        %v1128 = vld [vmem:[%s1125 + $0x10] sm:$0xff]
        %s1129 = scalar_lea.vmem %s6, 48
        %v1130 = vld [vmem:[%s1129] sm:$0xff]
        %v1131 = vld [vmem:[%s1129 + $0x8] sm:$0xff]
        %v1132 = vld [vmem:[%s1129 + $0x10] sm:$0xff]
        %1134 = vset.pattern.permute.xlu0 0
        %1135 = vperm.xlu0 %1134, %v1130
        %v1136 = vpop.permute.xlu0 %1135
        %1139 = vset.pattern.permute.xlu0 0
        %1140 = vperm.xlu0 %1139, %v1131
        %v1141 = vpop.permute.xlu0 %1140
        %1144 = vset.pattern.permute.xlu0 0
        %1145 = vperm.xlu0 %1144, %v1132
        %v1146 = vpop.permute.xlu0 %1145
        %v1149 = vsel %vm727, %v1126, 0
        %v1152 = vsel %vm727, %v1127, 0
        %v1155 = vsel %vm727, %v1128, 0
        %1157 = vmatprep.subr.mxu0 %v1114
        %1158 = vmatpush1.msra.mxu0 %v1113
        %1159 = vmatprep.subr.mxu0 %v1118
        %1160 = vmatpush1.msra.mxu0 %v1117
        %1161 = vmatprep.subr.mxu0 %v1122
        %1162 = vmatpush1.msra.mxu0 %v1121
        %1163 = vmatprep.subr.mxu0 0.0
        %1164 = vmatpush1.msra.mxu0 0.0
        %1165 = vmatprep.subr.mxu0 0.0
        %1166 = vmatpush1.msra.mxu0 0.0
        %1167 = vmatprep.subr.mxu0 0.0
        %1168 = vmatpush1.msra.mxu0 0.0
        %1169 = vmatprep.subr.mxu0 0.0
        %1170 = vmatpush1.msra.mxu0 0.0
        %1171 = vmatprep.subr.mxu0 0.0
        %1172 = vmatpush1.msra.mxu0 0.0
        %1173 = vmatprep.subr.mxu0 0.0
        %1174 = vmatpush1.msra.mxu0 0.0
        %1175 = vmatprep.subr.mxu0 0.0
        %1176 = vmatpush1.msra.mxu0 0.0
        %1177 = vmatprep.subr.mxu0 0.0
        %1178 = vmatpush1.msra.mxu0 0.0
        %1179 = vmatprep.subr.mxu0 0.0
        %1180 = vmatpush1.msra.mxu0 0.0
        %1181 = vmatprep.subr.mxu0 0.0
        %1182 = vmatpush1.msra.mxu0 0.0
        %1183 = vmatprep.subr.mxu0 0.0
        %1184 = vmatpush1.msra.mxu0 0.0
        %1185 = vmatprep.subr.mxu0 0.0
        %1186 = vmatpush1.msra.mxu0 0.0
        %1187 = vmatprep.subr.mxu0 0.0
        %1188 = vmatpush1.msra.mxu0 0.0
        %1189 = vmatprep.subr.mxu0 0.0
        %1190 = vmatpush1.msra.mxu0 0.0
        %1191 = vmatprep.subr.mxu0 0.0
        %1192 = vmatpush1.msra.mxu0 0.0
        %1193 = vmatprep.subr.mxu0 0.0
        %1194 = vmatpush1.msra.mxu0 0.0
        %1195 = vmatprep.subr.mxu0 0.0
        %1196 = vmatpush1.msra.mxu0 0.0
        %1197 = vmatprep.subr.mxu0 0.0
        %1198 = vmatpush1.msra.mxu0 0.0
        %1199 = vmatprep.subr.mxu0 0.0
        %1200 = vmatpush1.msra.mxu0 0.0
        %1201 = vmatprep.subr.mxu0 0.0
        %1202 = vmatpush1.msra.mxu0 0.0
        %1203 = vmatprep.subr.mxu0 0.0
        %1204 = vmatpush1.msra.mxu0 0.0
        %1205 = vmatprep.subr.mxu0 0.0
        %1206 = vmatpush1.msra.mxu0 0.0
        %1207 = vmatprep.subr.mxu0 0.0
        %1208 = vmatpush1.msra.mxu0 0.0
        %1209 = vmatprep.subr.mxu0 0.0
        %1210 = vmatpush1.msra.mxu0 0.0
        %1211 = vmatprep.subr.mxu0 0.0
        %1212 = vmatpush1.msra.mxu0 0.0
        %1213 = vmatprep.subr.mxu0 0.0
        %1214 = vmatpush1.msra.mxu0 0.0
        %1215 = vmatprep.subr.mxu0 0.0
        %1216 = vmatpush1.msra.mxu0 0.0
        %1217 = vmatprep.subr.mxu0 0.0
        %1218 = vmatpush1.msra.mxu0 0.0
        %1219 = vmatprep.subr.mxu0 0.0
        %1220 = vmatpush1.msra.mxu0 0.0
        %1221 = vmatprep.mubr.f32.mxu0 0.0
        %1222 = vmatmul.mubr.f32.gmra.mrb[0].mxu0 %v1149
        %v1223 = vpop.f32.mrb[0].mxu0
        %v1224 = vadd.f32 %v1136, %v1223
        %v1225 = vpop.f32.mrb[0].mxu0
        %v1226 = vadd.f32 %v1136, %v1225
        %1227 = vmatprep.mubr.f32.mxu0 0.0
        %1228 = vmatmul.mubr.f32.gmra.mrb[0].mxu0 %v1152
        %v1229 = vpop.f32.mrb[0].mxu0
        %v1230 = vadd.f32 %v1141, %v1229
        %v1231 = vpop.f32.mrb[0].mxu0
        %v1232 = vadd.f32 %v1141, %v1231
        %1233 = vmatprep.mubr.f32.mxu0 0.0
        %1234 = vmatmul.mubr.f32.gmra.mrb[0].mxu0 %v1155
        %v1235 = vpop.f32.mrb[0].mxu0
        %v1236 = vadd.f32 %v1146, %v1235
        %v1237 = vpop.f32.mrb[0].mxu0
        %v1238 = vadd.f32 %v1146, %v1237
        %1239 = vdwg.mxu0
        %1240 = vmatprep.subr.mxu0 %v1116
        %1241 = vmatpush1.msra.mxu0 %v1115
        %1242 = vmatprep.subr.mxu0 %v1120
        %1243 = vmatpush1.msra.mxu0 %v1119
        %1244 = vmatprep.subr.mxu0 %v1124
        %1245 = vmatpush1.msra.mxu0 %v1123
        %1246 = vmatprep.subr.mxu0 0.0
        %1247 = vmatpush1.msra.mxu0 0.0
        %1248 = vmatprep.subr.mxu0 0.0
        %1249 = vmatpush1.msra.mxu0 0.0
        %1250 = vmatprep.subr.mxu0 0.0
        %1251 = vmatpush1.msra.mxu0 0.0
        %1252 = vmatprep.subr.mxu0 0.0
        %1253 = vmatpush1.msra.mxu0 0.0
        %1254 = vmatprep.subr.mxu0 0.0
        %1255 = vmatpush1.msra.mxu0 0.0
        %1256 = vmatprep.subr.mxu0 0.0
        %1257 = vmatpush1.msra.mxu0 0.0
        %1258 = vmatprep.subr.mxu0 0.0
        %1259 = vmatpush1.msra.mxu0 0.0
        %1260 = vmatprep.subr.mxu0 0.0
        %1261 = vmatpush1.msra.mxu0 0.0
        %1262 = vmatprep.subr.mxu0 0.0
        %1263 = vmatpush1.msra.mxu0 0.0
        %1264 = vmatprep.subr.mxu0 0.0
        %1265 = vmatpush1.msra.mxu0 0.0
        %1266 = vmatprep.subr.mxu0 0.0
        %1267 = vmatpush1.msra.mxu0 0.0
        %1268 = vmatprep.subr.mxu0 0.0
        %1269 = vmatpush1.msra.mxu0 0.0
        %1270 = vmatprep.subr.mxu0 0.0
        %1271 = vmatpush1.msra.mxu0 0.0
        %1272 = vmatprep.subr.mxu0 0.0
        %1273 = vmatpush1.msra.mxu0 0.0
        %1274 = vmatprep.subr.mxu0 0.0
        %1275 = vmatpush1.msra.mxu0 0.0
        %1276 = vmatprep.subr.mxu0 0.0
        %1277 = vmatpush1.msra.mxu0 0.0
        %1278 = vmatprep.subr.mxu0 0.0
        %1279 = vmatpush1.msra.mxu0 0.0
        %1280 = vmatprep.subr.mxu0 0.0
        %1281 = vmatpush1.msra.mxu0 0.0
        %1282 = vmatprep.subr.mxu0 0.0
        %1283 = vmatpush1.msra.mxu0 0.0
        %1284 = vmatprep.subr.mxu0 0.0
        %1285 = vmatpush1.msra.mxu0 0.0
        %1286 = vmatprep.subr.mxu0 0.0
        %1287 = vmatpush1.msra.mxu0 0.0
        %1288 = vmatprep.subr.mxu0 0.0
        %1289 = vmatpush1.msra.mxu0 0.0
        %1290 = vmatprep.subr.mxu0 0.0
        %1291 = vmatpush1.msra.mxu0 0.0
        %1292 = vmatprep.subr.mxu0 0.0
        %1293 = vmatpush1.msra.mxu0 0.0
        %1294 = vmatprep.subr.mxu0 0.0
        %1295 = vmatpush1.msra.mxu0 0.0
        %1296 = vmatprep.subr.mxu0 0.0
        %1297 = vmatpush1.msra.mxu0 0.0
        %1298 = vmatprep.subr.mxu0 0.0
        %1299 = vmatpush1.msra.mxu0 0.0
        %1300 = vmatprep.subr.mxu0 0.0
        %1301 = vmatpush1.msra.mxu0 0.0
        %1302 = vmatprep.subr.mxu0 0.0
        %1303 = vmatpush1.msra.mxu0 0.0
        %1304 = vmatprep.mubr.f32.mxu0 0.0
        %1305 = vmatmul.mubr.f32.gmra.mrb[0].mxu0 %v1149
        %v1306 = vpop.f32.mrb[0].mxu0
        %v1307 = vadd.f32 %v1136, %v1306
        %v1308 = vpop.f32.mrb[0].mxu0
        %v1309 = vadd.f32 %v1136, %v1308
        %1310 = vmatprep.mubr.f32.mxu0 0.0
        %1311 = vmatmul.mubr.f32.gmra.mrb[0].mxu0 %v1152
        %v1312 = vpop.f32.mrb[0].mxu0
        %v1313 = vadd.f32 %v1141, %v1312
        %v1314 = vpop.f32.mrb[0].mxu0
        %v1315 = vadd.f32 %v1141, %v1314
        %1316 = vmatprep.mubr.f32.mxu0 0.0
        %1317 = vmatmul.mubr.f32.gmra.mrb[0].mxu0 %v1155
        %v1318 = vpop.f32.mrb[0].mxu0
        %v1319 = vadd.f32 %v1146, %v1318
        %v1320 = vpop.f32.mrb[0].mxu0
        %v1321 = vadd.f32 %v1146, %v1320
        %1322 = vdwg.mxu0
        %v1323 = vtanh.pop %v1224
        %v1324 = vtanh.pop %v1226
        %v1325 = vtanh.pop %v1307
        %v1326 = vtanh.pop %v1309
        %v1327 = vtanh.pop %v1230
        %v1328 = vtanh.pop %v1232
        %v1329 = vtanh.pop %v1313
        %v1330 = vtanh.pop %v1315
        %v1331 = vtanh.pop %v1236
        %v1332 = vtanh.pop %v1238
        %v1333 = vtanh.pop %v1319
        %v1334 = vtanh.pop %v1321
        %v1335 = vld [vmem:[%s7] sm:$0x3]
        %v1336 = vld [vmem:[%s8] sm:$0x3]
        %1338 = vset.pattern.permute.xlu0 0
        %1339 = vperm.xlu0 %1338, %v1336
        %v1340 = vpop.permute.xlu0 %1339
        %v1343 = vsel %vm727, %v1335, 0
        %1345 = vmatprep.subr.mxu0 %v1324
        %1346 = vmatpush1.msra.mxu0 %v1323
        %1347 = vmatprep.subr.mxu0 %v1328
        %1348 = vmatpush1.msra.mxu0 %v1327
        %1349 = vmatprep.subr.mxu0 %v1332
        %1350 = vmatpush1.msra.mxu0 %v1331
        %1351 = vmatprep.subr.mxu0 0.0
        %1352 = vmatpush1.msra.mxu0 0.0
        %1353 = vmatprep.subr.mxu0 0.0
        %1354 = vmatpush1.msra.mxu0 0.0
        %1355 = vmatprep.subr.mxu0 0.0
        %1356 = vmatpush1.msra.mxu0 0.0
        %1357 = vmatprep.subr.mxu0 0.0
        %1358 = vmatpush1.msra.mxu0 0.0
        %1359 = vmatprep.subr.mxu0 0.0
        %1360 = vmatpush1.msra.mxu0 0.0
        %1361 = vmatprep.subr.mxu0 0.0
        %1362 = vmatpush1.msra.mxu0 0.0
        %1363 = vmatprep.subr.mxu0 0.0
        %1364 = vmatpush1.msra.mxu0 0.0
        %1365 = vmatprep.subr.mxu0 0.0
        %1366 = vmatpush1.msra.mxu0 0.0
        %1367 = vmatprep.subr.mxu0 0.0
        %1368 = vmatpush1.msra.mxu0 0.0
        %1369 = vmatprep.subr.mxu0 0.0
        %1370 = vmatpush1.msra.mxu0 0.0
        %1371 = vmatprep.subr.mxu0 0.0
        %1372 = vmatpush1.msra.mxu0 0.0
        %1373 = vmatprep.subr.mxu0 0.0
        %1374 = vmatpush1.msra.mxu0 0.0
        %1375 = vmatprep.subr.mxu0 0.0
        %1376 = vmatpush1.msra.mxu0 0.0
        %1377 = vmatprep.subr.mxu0 0.0
        %1378 = vmatpush1.msra.mxu0 0.0
        %1379 = vmatprep.subr.mxu0 0.0
        %1380 = vmatpush1.msra.mxu0 0.0
        %1381 = vmatprep.subr.mxu0 0.0
        %1382 = vmatpush1.msra.mxu0 0.0
        %1383 = vmatprep.subr.mxu0 0.0
        %1384 = vmatpush1.msra.mxu0 0.0
        %1385 = vmatprep.subr.mxu0 0.0
        %1386 = vmatpush1.msra.mxu0 0.0
        %1387 = vmatprep.subr.mxu0 0.0
        %1388 = vmatpush1.msra.mxu0 0.0
        %1389 = vmatprep.subr.mxu0 0.0
        %1390 = vmatpush1.msra.mxu0 0.0
        %1391 = vmatprep.subr.mxu0 0.0
        %1392 = vmatpush1.msra.mxu0 0.0
        %1393 = vmatprep.subr.mxu0 0.0
        %1394 = vmatpush1.msra.mxu0 0.0
        %1395 = vmatprep.subr.mxu0 0.0
        %1396 = vmatpush1.msra.mxu0 0.0
        %1397 = vmatprep.subr.mxu0 0.0
        %1398 = vmatpush1.msra.mxu0 0.0
        %1399 = vmatprep.subr.mxu0 0.0
        %1400 = vmatpush1.msra.mxu0 0.0
        %1401 = vmatprep.subr.mxu0 0.0
        %1402 = vmatpush1.msra.mxu0 0.0
        %1403 = vmatprep.subr.mxu0 0.0
        %1404 = vmatpush1.msra.mxu0 0.0
        %1405 = vmatprep.subr.mxu0 0.0
        %1406 = vmatpush1.msra.mxu0 0.0
        %1407 = vmatprep.subr.mxu0 0.0
        %1408 = vmatpush1.msra.mxu0 0.0
        %1409 = vmatprep.mubr.f32.mxu0 0.0
        %1410 = vmatmul.mubr.f32.gmra.mrb[0].mxu0 %v1343
        %v1411 = vpop.f32.mrb[0].mxu0
        %v1412 = vadd.f32 %v1340, %v1411
        %v1413 = vpop.f32.mrb[0].mxu0
        %v1414 = vadd.f32 %v1340, %v1413
        %1415 = vdwg.mxu0
        %1416 = vmatprep.subr.mxu0 %v1326
        %1417 = vmatpush1.msra.mxu0 %v1325
        %1418 = vmatprep.subr.mxu0 %v1330
        %1419 = vmatpush1.msra.mxu0 %v1329
        %1420 = vmatprep.subr.mxu0 %v1334
        %1421 = vmatpush1.msra.mxu0 %v1333
        %1422 = vmatprep.subr.mxu0 0.0
        %1423 = vmatpush1.msra.mxu0 0.0
        %1424 = vmatprep.subr.mxu0 0.0
        %1425 = vmatpush1.msra.mxu0 0.0
        %1426 = vmatprep.subr.mxu0 0.0
        %1427 = vmatpush1.msra.mxu0 0.0
        %1428 = vmatprep.subr.mxu0 0.0
        %1429 = vmatpush1.msra.mxu0 0.0
        %1430 = vmatprep.subr.mxu0 0.0
        %1431 = vmatpush1.msra.mxu0 0.0
        %1432 = vmatprep.subr.mxu0 0.0
        %1433 = vmatpush1.msra.mxu0 0.0
        %1434 = vmatprep.subr.mxu0 0.0
        %1435 = vmatpush1.msra.mxu0 0.0
        %1436 = vmatprep.subr.mxu0 0.0
        %1437 = vmatpush1.msra.mxu0 0.0
        %1438 = vmatprep.subr.mxu0 0.0
        %1439 = vmatpush1.msra.mxu0 0.0
        %1440 = vmatprep.subr.mxu0 0.0
        %1441 = vmatpush1.msra.mxu0 0.0
        %1442 = vmatprep.subr.mxu0 0.0
        %1443 = vmatpush1.msra.mxu0 0.0
        %1444 = vmatprep.subr.mxu0 0.0
        %1445 = vmatpush1.msra.mxu0 0.0
        %1446 = vmatprep.subr.mxu0 0.0
        %1447 = vmatpush1.msra.mxu0 0.0
        %1448 = vmatprep.subr.mxu0 0.0
        %1449 = vmatpush1.msra.mxu0 0.0
        %1450 = vmatprep.subr.mxu0 0.0
        %1451 = vmatpush1.msra.mxu0 0.0
        %1452 = vmatprep.subr.mxu0 0.0
        %1453 = vmatpush1.msra.mxu0 0.0
        %1454 = vmatprep.subr.mxu0 0.0
        %1455 = vmatpush1.msra.mxu0 0.0
        %1456 = vmatprep.subr.mxu0 0.0
        %1457 = vmatpush1.msra.mxu0 0.0
        %1458 = vmatprep.subr.mxu0 0.0
        %1459 = vmatpush1.msra.mxu0 0.0
        %1460 = vmatprep.subr.mxu0 0.0
        %1461 = vmatpush1.msra.mxu0 0.0
        %1462 = vmatprep.subr.mxu0 0.0
        %1463 = vmatpush1.msra.mxu0 0.0
        %1464 = vmatprep.subr.mxu0 0.0
        %1465 = vmatpush1.msra.mxu0 0.0
        %1466 = vmatprep.subr.mxu0 0.0
        %1467 = vmatpush1.msra.mxu0 0.0
        %1468 = vmatprep.subr.mxu0 0.0
        %1469 = vmatpush1.msra.mxu0 0.0
        %1470 = vmatprep.subr.mxu0 0.0
        %1471 = vmatpush1.msra.mxu0 0.0
        %1472 = vmatprep.subr.mxu0 0.0
        %1473 = vmatpush1.msra.mxu0 0.0
        %1474 = vmatprep.subr.mxu0 0.0
        %1475 = vmatpush1.msra.mxu0 0.0
        %1476 = vmatprep.subr.mxu0 0.0
        %1477 = vmatpush1.msra.mxu0 0.0
        %1478 = vmatprep.subr.mxu0 0.0
        %1479 = vmatpush1.msra.mxu0 0.0
        %1480 = vmatprep.mubr.f32.mxu0 0.0
        %1481 = vmatmul.mubr.f32.gmra.mrb[0].mxu0 %v1343
        %v1482 = vpop.f32.mrb[0].mxu0
        %v1483 = vadd.f32 %v1340, %v1482
        %v1484 = vpop.f32.mrb[0].mxu0
        %v1485 = vadd.f32 %v1340, %v1484
        %1486 = vdwg.mxu0
        %v1487 = vxor.u32 %v1412, 2147483648
        %v1488 = vxor.u32 %v1414, 2147483648
        %v1489 = vxor.u32 %v1483, 2147483648
        %v1490 = vxor.u32 %v1485, 2147483648
        %v1491 = vmul.f32 %v1487, 1.442695
        %v1492 = vpow.pop %v1491
        %v1493 = vmul.f32 %v1488, 1.442695
        %v1494 = vpow.pop %v1493
        %v1495 = vmul.f32 %v1489, 1.442695
        %v1496 = vpow.pop %v1495
        %v1497 = vmul.f32 %v1490, 1.442695
        %v1498 = vpow.pop %v1497
        %v1499 = vadd.f32 %v1492, 1.0
        %v1500 = vadd.f32 %v1494, 1.0
        %v1501 = vadd.f32 %v1496, 1.0
        %v1502 = vadd.f32 %v1498, 1.0
        %v1503 = vrcp.pop %v1499
        %v1504 = vmul.f32 1.0, %v1503
        %v1505 = vrcp.pop %v1500
        %v1506 = vmul.f32 1.0, %v1505
        %v1507 = vrcp.pop %v1501
        %v1508 = vmul.f32 1.0, %v1507
        %v1509 = vrcp.pop %v1502
        %v1510 = vmul.f32 1.0, %v1509
        %v1515 = vcombine.low %v1504, %v1506
        %v1516 = vcombine.low %v1508, %v1510
        %v1518 = vunpack.c.l.s4 1966171168
        %v1519 = vunpack.c.0.s8 %v1518
        %v1520 = vlaneseq
        %v1521 = vshrl.u32 %v1520, 7
        %v1522 = vsub.s32 %v1519, %v1521
        %v1523 = vrot.slane %v1515, %v1522
        %v1525 = vunpack.c.l.s4 1966171168
        %v1526 = vunpack.c.0.s8 %v1525
        %v1527 = vlaneseq
        %v1528 = vshrl.u32 %v1527, 7
        %v1529 = vsub.s32 %v1526, %v1528
        %v1530 = vrot.slane %v1516, %v1529
        %v1531 = vcombine.low %v1523, %v1530
        %v1533 = vunpack.c.l.s4 1966171168
        %v1534 = vunpack.c.0.s8 %v1533
        %v1535 = vlaneseq
        %v1536 = vshrl.u32 %v1535, 7
        %v1537 = vsub.s32 %v1534, %v1536
        %v1538 = vrot.slane %v1531, %v1537
        %v1540 = vlaneseq
        %vm1541 = vcmp.ge.s32.totalorder %v1540, 0
        %vm1542 = vcmp.lt.s32.totalorder %v1540, 512
        %vm1543 = vmand %vm1541, %vm1542
        %1544 = vst.msk [vmem:[%s383] sm:$0xf] %vm1543, %v1538
        %v1545 = vcombine.high %v1523, %v1530
        %v1547 = vunpack.c.l.s4 1966171168
        %v1548 = vunpack.c.0.s8 %v1547
        %v1549 = vlaneseq
        %v1550 = vshrl.u32 %v1549, 7
        %v1551 = vsub.s32 %v1548, %v1550
        %v1552 = vrot.slane %v1545, %v1551
        %1554 = vst.msk [vmem:[%s390] sm:$0xf] %vm1543, %v1552
        %s1555 = sand.u32 %s240, 1
        %s1556 = scalar_lea.sflag [#allocation3], %s1555
        %s1557 = sand.u32 %s240, 1
        %s1558 = smul.addr %s1557, 4
        %s1559 = scalar_lea.vmem [#allocation2], %s1558
        %s1560 = sand.u32 %s266, 1
        %s1561 = scalar_lea.sflag [#allocation5], %s1560
        %s1562 = sand.u32 %s266, 1
        %s1563 = smul.addr %s1562, 4
        %s1564 = scalar_lea.vmem [#allocation4], %s1563
        // Predicated region
        $region57: #{gray_scott_forward.1} parent=55 // pred_check
          %p1565 = pneg %p250
        $region58: #{gray_scott_forward.1} parent=55 // pred_check_branch
          %1567 = sbr.rel (%p1565) target = $region60
        $region59: #{gray_scott_forward.1} parent=55 // pred_region
          %s1568 = smul.u32 4, %s28
          %s1570 = ssub.s32 64, 64
          %1571 = vsyncadd %s1556, %s1570
          %s1572 = smul.addr %s1568, 16
          %s1573 = scalar_lea.hbm %s9, %s1572
          %s1575 = sshll.u32 %s1559, 4
          %s1576 = int_to_ptr.vmem [resolvable:$true] %s1575
          %1578 = dma.vmem_to_hbm [thread:$0]  %s1576, 64, %s1573, %s1556
        $region60: #{gray_scott_forward.1} parent=55 // pred_fallthru
          _
        // Predicated region
        $region61: #{gray_scott_forward.1} parent=55 // pred_check
          %p1579 = pneg %p276
        $region62: #{gray_scott_forward.1} parent=55 // pred_check_branch
          %1581 = sbr.rel (%p1579) target = $region64
        $region63: #{gray_scott_forward.1} parent=55 // pred_region
          %s1582 = smul.u32 4, %s28
          %s1584 = ssub.s32 64, 64
          %1585 = vsyncadd %s1561, %s1584
          %s1586 = smul.addr %s1582, 16
          %s1587 = scalar_lea.hbm %s10, %s1586
          %s1589 = sshll.u32 %s1564, 4
          %s1590 = int_to_ptr.vmem [resolvable:$true] %s1589
          %1592 = dma.vmem_to_hbm [thread:$0]  %s1590, 64, %s1587, %s1561
        $region64: #{gray_scott_forward.1} parent=55 // pred_fallthru
          _
      $region56: #{gray_scott_forward.1} parent=5 // pred_fallthru
        _
      %p1593 = scmp.le.s32.totalorder 2, %s23
      // Predicated region
      $region65: #{gray_scott_forward.1} parent=5 // pred_check
        %p1594 = pneg %p1593
      $region66: #{gray_scott_forward.1} parent=5 // pred_check_branch
        %1596 = sbr.rel (%p1594) target = $region68
      $region67: #{gray_scott_forward.1} parent=5 // pred_region
        %s1597 = ssub.s32 %s23, 2
        // Predicated region
        $region69: #{gray_scott_forward.1} parent=67 // pred_check
          %p1598 = pneg %p256
        $region70: #{gray_scott_forward.1} parent=67 // pred_check_branch
          %1600 = sbr.rel (%p1598) target = $region72
        $region71: #{gray_scott_forward.1} parent=67 // pred_region
          %s1601 = sand.u32 %s241, 1
          %s1602 = scalar_lea.sflag [#allocation3], %s1601
          %s1603 = sand.u32 %s241, 1
          %s1604 = smul.addr %s1603, 4
          %s1605 = scalar_lea.vmem [#allocation2], %s1604
          %1606 = dma.done %s1602, 64
        $region72: #{gray_scott_forward.1} parent=67 // pred_fallthru
          _
        // Predicated region
        $region73: #{gray_scott_forward.1} parent=67 // pred_check
          %p1607 = pneg %p282
        $region74: #{gray_scott_forward.1} parent=67 // pred_check_branch
          %1609 = sbr.rel (%p1607) target = $region76
        $region75: #{gray_scott_forward.1} parent=67 // pred_region
          %s1610 = sand.u32 %s267, 1
          %s1611 = scalar_lea.sflag [#allocation5], %s1610
          %s1612 = sand.u32 %s267, 1
          %s1613 = smul.addr %s1612, 4
          %s1614 = scalar_lea.vmem [#allocation4], %s1613
          %1615 = dma.done %s1611, 64
        $region76: #{gray_scott_forward.1} parent=67 // pred_fallthru
          _
      $region68: #{gray_scott_forward.1} parent=5 // pred_fallthru
        _
    $region6: #{gray_scott_forward.1} parent=1 // loop_footer
      %s27 = sadd.s32 1, %s23
    $region7: #{gray_scott_forward.1} parent=1 // loop_footer_branch
      %22 = sbr.rel target = $region3
    $region8: #{gray_scott_forward.1} parent=1 // loop_exit
      _
    %1616 = vsyncpa [#allocation3], 1
    %s1617 = scalar_lea.sflag [#allocation3], 1
    %1618 = vsyncpa %s1617, 1
    %1619 = vsyncpa [#allocation5], 1
    %s1620 = scalar_lea.sflag [#allocation5], 1
    %1621 = vsyncpa %s1620, 1

</llo_original>
